<compile_context>
chip_gen: v6e
topology: v6e:2x2x1
jax: 0.10.0
libtpu: 0.0.40
codegen_flags: <defaults>
</compile_context>

<pallas_src>
import functools

import jax
import jax.numpy as jnp
from jax import lax
from jax.experimental import pallas as pl
from jax.experimental.pallas import tpu as pltpu

LANE = 128
SUBLANE = 8
_EPS = 1e-5


def _round_up(x, m):
    return (x + m - 1) // m * m


def _compiler_params():
    # Explicit, generation-aware-ish scoped VMEM limit (well under v7x's 64 MiB
    # physical); grid row axis is parallel so v7x can shard across its 2 TCs.
    return pltpu.CompilerParams(
        dimension_semantics=("parallel",),
        vmem_limit_bytes=48 * 1024 * 1024)


# ---------------------------------------------------------------------------
# In-kernel helpers
# ---------------------------------------------------------------------------

def _halo_start(src_any, hbuf, sem, r0, row_tile, total_rows):
    """Start the two single-row halo DMAs (row above / row below the tile).

    The clamped reads at the global ends fetch a harmless wrong row; those taps
    are masked out anyway (they correspond to the conv's zero padding)."""
    top = jnp.maximum(r0 - 1, 0)
    bot = jnp.minimum(r0 + row_tile, total_rows - 1)
    cp_t = pltpu.make_async_copy(src_any.at[pl.ds(top, 1)], hbuf.at[0], sem.at[0])
    cp_b = pltpu.make_async_copy(src_any.at[pl.ds(bot, 1)], hbuf.at[1], sem.at[1])
    cp_t.start()
    cp_b.start()
    return cp_t, cp_b


def _neighbor_taps(center, top, bot, pos, seq_len):
    """Row windows shifted by -1 / +1 using the halo rows; taps that would cross a
    sequence boundary (zero padding of the conv) or read padding rows are zeroed."""
    t0 = jnp.concatenate([top, center[:-1, :]], axis=0)        # x[t-1]
    t2 = jnp.concatenate([center[1:, :], bot], axis=0)         # x[t+1]
    t0 = jnp.where(pos > 0, t0, 0)
    t2 = jnp.where(jnp.logical_and(pos >= 0, pos < seq_len - 1), t2, 0)
    return t0, t2


def _finish_conv(y, center, top, bot, pos, w_ref, bias, *, seq_len, mxu_dtype):
    """Add the two neighbor-tap matmuls and the bias to the center-tap result."""
    t0, t2 = _neighbor_taps(center, top, bot, pos, seq_len)
    y = y + jnp.dot(t0.astype(mxu_dtype), w_ref[0], preferred_element_type=jnp.float32)
    y = y + jnp.dot(t2.astype(mxu_dtype), w_ref[2], preferred_element_type=jnp.float32)
    return y + bias


def _tile_stats(y, valid):
    """Per-tile per-channel sum and *centered* sum-of-squares (Chan / shifted
    accumulation -> no E[x^2]-E[x]^2 cancellation); padding rows are masked."""
    ym = jnp.where(valid, y, 0.0)
    s = jnp.sum(ym, axis=0, keepdims=True)                      # (1, C)
    cnt = jnp.sum(valid.astype(jnp.float32), axis=0, keepdims=True)  # (1, 1)
    mu = s / jnp.maximum(cnt, 1.0)
    d = jnp.where(valid, y - mu, 0.0)
    q = jnp.sum(d * d, axis=0, keepdims=True)                   # (1, C)
    return s, q


# ---------------------------------------------------------------------------
# Kernels
# ---------------------------------------------------------------------------

def _conv1_sc_kernel(x_ref, pos_ref, x_any, w_ref, b_ref, ws_ref,
                     y_ref, s_ref, q_ref, ys_ref, ss_ref, qs_ref,
                     hbuf, sem, *, row_tile, seq_len, total_rows, mxu_dtype):
    """conv1 (K=3) + fused 1x1 shortcut conv, plus BN partial statistics for both."""
    r0 = pl.program_id(0) * row_tile
    cp_t, cp_b = _halo_start(x_any, hbuf, sem, r0, row_tile, total_rows)

    center = x_ref[...]
    pos = pos_ref[...]
    valid = pos >= 0
    cm = center.astype(mxu_dtype)

    # Work that does not need the halo rows overlaps the two tiny halo DMAs.
    y = jnp.dot(cm, w_ref[1], preferred_element_type=jnp.float32)
    ys = jnp.dot(cm, ws_ref[...], preferred_element_type=jnp.float32)  # shortcut (no bias)
    ys_ref[...] = ys.astype(ys_ref.dtype)
    ss, qs = _tile_stats(ys, valid)
    ss_ref[...] = ss[None]
    qs_ref[...] = qs[None]

    cp_t.wait()
    cp_b.wait()
    y = _finish_conv(y, center, hbuf[0], hbuf[1], pos, w_ref, b_ref[...],
                     seq_len=seq_len, mxu_dtype=mxu_dtype)
    y_ref[...] = y.astype(y_ref.dtype)
    s, q = _tile_stats(y, valid)
    s_ref[...] = s[None]
    q_ref[...] = q[None]


def _conv1_kernel(x_ref, pos_ref, x_any, w_ref, b_ref,
                  y_ref, s_ref, q_ref,
                  hbuf, sem, *, row_tile, seq_len, total_rows, mxu_dtype):
    """conv1 (K=3) + BN partial statistics (identity-shortcut variant)."""
    r0 = pl.program_id(0) * row_tile
    cp_t, cp_b = _halo_start(x_any, hbuf, sem, r0, row_tile, total_rows)

    center = x_ref[...]
    pos = pos_ref[...]
    valid = pos >= 0
    y = jnp.dot(center.astype(mxu_dtype), w_ref[1], preferred_element_type=jnp.float32)

    cp_t.wait()
    cp_b.wait()
    y = _finish_conv(y, center, hbuf[0], hbuf[1], pos, w_ref, b_ref[...],
                     seq_len=seq_len, mxu_dtype=mxu_dtype)
    y_ref[...] = y.astype(y_ref.dtype)
    s, q = _tile_stats(y, valid)
    s_ref[...] = s[None]
    q_ref[...] = q[None]


def _conv2_kernel(y1_ref, pos_ref, y1_any, sc1_ref, sh1_ref, w_ref, b_ref,
                  y2_ref, s_ref, q_ref,
                  hbuf, sem, *, row_tile, seq_len, total_rows, mxu_dtype):
    """Fused BN1 affine + ReLU + conv2 (K=3) + BN2 partial statistics."""
    r0 = pl.program_id(0) * row_tile
    cp_t, cp_b = _halo_start(y1_any, hbuf, sem, r0, row_tile, total_rows)

    pos = pos_ref[...]
    valid = pos >= 0
    sc1 = sc1_ref[...]
    sh1 = sh1_ref[...]

    # BN1 pass-2 + ReLU applied in VMEM (no HBM round trip for h1).
    h_c = jnp.maximum(y1_ref[...].astype(jnp.float32) * sc1 + sh1, 0.0)
    y = jnp.dot(h_c.astype(mxu_dtype), w_ref[1], preferred_element_type=jnp.float32)

    cp_t.wait()
    cp_b.wait()
    h_t = jnp.maximum(hbuf[0].astype(jnp.float32) * sc1 + sh1, 0.0)
    h_b = jnp.maximum(hbuf[1].astype(jnp.float32) * sc1 + sh1, 0.0)
    y = _finish_conv(y, h_c, h_t, h_b, pos, w_ref, b_ref[...],
                     seq_len=seq_len, mxu_dtype=mxu_dtype)
    y2_ref[...] = y.astype(y2_ref.dtype)
    s, q = _tile_stats(y, valid)
    s_ref[...] = s[None]
    q_ref[...] = q[None]


def _epilogue_kernel(y2_ref, res_ref, u_ref, wm_ref, bm_ref,
                     sc2_ref, sh2_ref, scr_ref, shr_ref, o_ref, *, mxu_dtype):
    """mod = u @ Wm + bm; (gamma_f, beta_f) = chunk(mod);
    out = relu(gamma_f * bn2(y2) + beta_f + bn_shortcut(res))."""
    cp = y2_ref.shape[-1]
    mod = jnp.dot(u_ref[...].astype(mxu_dtype), wm_ref[...],
                  preferred_element_type=jnp.float32) + bm_ref[...]
    gamma_f = mod[:, :cp]
    beta_f = mod[:, cp:]
    h2 = y2_ref[...].astype(jnp.float32) * sc2_ref[...] + sh2_ref[...]
    res = res_ref[...].astype(jnp.float32) * scr_ref[...] + shr_ref[...]
    o_ref[...] = jnp.maximum(gamma_f * h2 + beta_f + res, 0.0)


# ---------------------------------------------------------------------------
# pallas_call wrappers
# ---------------------------------------------------------------------------

def _conv1_call(x_rows, pos, w_taps, bias, ws, *, row_tile, seq_len, mxu_dtype):
    r_pad, cin_p = x_rows.shape
    cout_p = w_taps.shape[-1]
    store_dtype = x_rows.dtype
    t = r_pad // row_tile

    act_spec = pl.BlockSpec((row_tile, cout_p), lambda i: (i, 0))
    stat_spec = pl.BlockSpec((1, 1, cout_p), lambda i: (i, 0, 0))
    act_shape = jax.ShapeDtypeStruct((r_pad, cout_p), store_dtype)
    stat_shape = jax.ShapeDtypeStruct((t, 1, cout_p), jnp.float32)

    in_specs = [pl.BlockSpec((row_tile, cin_p), lambda i: (i, 0)),   # x (pipelined)
                pl.BlockSpec((row_tile, 1), lambda i: (i, 0)),        # positions
                pl.BlockSpec(memory_space=pl.ANY),                    # x (halo rows)
                pl.BlockSpec((3, cin_p, cout_p), lambda i: (0, 0, 0)),  # resident taps
                pl.BlockSpec((1, cout_p), lambda i: (0, 0))]          # resident bias
    args = [x_rows, pos, x_rows, w_taps, bias]
    out_shape = [act_shape, stat_shape, stat_shape]
    out_specs = [act_spec, stat_spec, stat_spec]

    if ws is not None:
        in_specs.append(pl.BlockSpec((cin_p, cout_p), lambda i: (0, 0)))
        args.append(ws)
        out_shape += [act_shape, stat_shape, stat_shape]
        out_specs += [act_spec, stat_spec, stat_spec]
        body = _conv1_sc_kernel
    else:
        body = _conv1_kernel

    kernel = functools.partial(body, row_tile=row_tile, seq_len=seq_len,
                               total_rows=r_pad, mxu_dtype=mxu_dtype)
    return pl.pallas_call(
        kernel,
        out_shape=tuple(out_shape),
        grid=(t,),
        in_specs=in_specs,
        out_specs=tuple(out_specs),
        scratch_shapes=[pltpu.VMEM((2, 1, cin_p), store_dtype),
                        pltpu.SemaphoreType.DMA((2,))],
        compiler_params=_compiler_params(),
    )(*args)


def _conv2_call(y1, pos, scale, shift, w_taps, bias, *, row_tile, seq_len, mxu_dtype):
    r_pad, cout_p = y1.shape
    store_dtype = y1.dtype
    t = r_pad // row_tile
    kernel = functools.partial(_conv2_kernel, row_tile=row_tile, seq_len=seq_len,
                               total_rows=r_pad, mxu_dtype=mxu_dtype)
    return pl.pallas_call(
        kernel,
        out_shape=(jax.ShapeDtypeStruct((r_pad, cout_p), store_dtype),
                   jax.ShapeDtypeStruct((t, 1, cout_p), jnp.float32),
                   jax.ShapeDtypeStruct((t, 1, cout_p), jnp.float32)),
        grid=(t,),
        in_specs=[pl.BlockSpec((row_tile, cout_p), lambda i: (i, 0)),   # y1 (pipelined)
                  pl.BlockSpec((row_tile, 1), lambda i: (i, 0)),         # positions
                  pl.BlockSpec(memory_space=pl.ANY),                     # y1 (halo rows)
                  pl.BlockSpec((1, cout_p), lambda i: (0, 0)),           # bn1 scale
                  pl.BlockSpec((1, cout_p), lambda i: (0, 0)),           # bn1 shift
                  pl.BlockSpec((3, cout_p, cout_p), lambda i: (0, 0, 0)),
                  pl.BlockSpec((1, cout_p), lambda i: (0, 0))],
        out_specs=(pl.BlockSpec((row_tile, cout_p), lambda i: (i, 0)),
                   pl.BlockSpec((1, 1, cout_p), lambda i: (i, 0, 0)),
                   pl.BlockSpec((1, 1, cout_p), lambda i: (i, 0, 0))),
        scratch_shapes=[pltpu.VMEM((2, 1, cout_p), store_dtype),
                        pltpu.SemaphoreType.DMA((2,))],
        compiler_params=_compiler_params(),
    )(y1, pos, y1, scale, shift, w_taps, bias)


def _epilogue_call(y2, res, u_rows, wm, bm, sc2, sh2, scr, shr, *, row_tile, mxu_dtype):
    r_pad, cout_p = y2.shape
    cu_p = u_rows.shape[1]
    t = r_pad // row_tile
    kernel = functools.partial(_epilogue_kernel, mxu_dtype=mxu_dtype)

    def vec(c):
        return pl.BlockSpec((1, c), lambda i: (0, 0))

    return pl.pallas_call(
        kernel,
        out_shape=jax.ShapeDtypeStruct((r_pad, cout_p), jnp.float32),
        grid=(t,),
        in_specs=[pl.BlockSpec((row_tile, cout_p), lambda i: (i, 0)),   # y2 (raw conv2)
                  pl.BlockSpec((row_tile, cout_p), lambda i: (i, 0)),   # residual (raw)
                  pl.BlockSpec((row_tile, cu_p), lambda i: (i, 0)),     # unvoiced rows
                  pl.BlockSpec((cu_p, 2 * cout_p), lambda i: (0, 0)),   # mod weight
                  vec(2 * cout_p),                                      # mod bias
                  vec(cout_p), vec(cout_p),                             # bn2 scale/shift
                  vec(cout_p), vec(cout_p)],                            # shortcut scale/shift
        out_specs=pl.BlockSpec((row_tile, cout_p), lambda i: (i, 0)),
        compiler_params=_compiler_params(),
    )(y2, res, u_rows, wm, bm, sc2, sh2, scr, shr)


# ---------------------------------------------------------------------------
# Host-side glue (layout, weight packing, Chan stat reduction)
# ---------------------------------------------------------------------------

def _bn_affine(s, q, cnt, gamma, beta, n_valid):
    """Combine per-tile (sum, centered sumsq) via Chan's parallel formula and fold
    the batch-stat BatchNorm into per-channel (scale, shift)."""
    total = jnp.sum(s, axis=0)                                   # (1, C)
    mean = total / n_valid
    mean_i = s / jnp.maximum(cnt, 1.0)                           # (T, 1, C)
    m2 = jnp.sum(q, axis=0) + jnp.sum(cnt * (mean_i - mean) ** 2, axis=0)
    var = jnp.maximum(m2 / n_valid, 0.0)
    inv = lax.rsqrt(var + _EPS)
    scale = gamma * inv
    shift = beta - mean * scale
    return scale, shift


def _pad_taps(w_oik, ci_p, co_p):
    """PyTorch conv weight (Cout, Cin, K) -> (K, Cin_p, Cout_p) tap stack."""
    co, ci, k = w_oik.shape
    w = jnp.transpose(w_oik, (2, 1, 0)).astype(jnp.float32)
    return jnp.pad(w, ((0, 0), (0, ci_p - ci), (0, co_p - co)))


def _pad_vec(v, cp):
    return jnp.pad(v.astype(jnp.float32), (0, cp - v.shape[0])).reshape(1, cp)


def residual_block1d(x_ncl, u_ncl, params, *, row_tile=256,
                     mxu_dtype=jnp.float32, store_dtype=None):
    """ResidualBlock1D forward (training-mode batch-stat BN), stride=1, K=3.

    x_ncl: (N, Cin, L); u_ncl: (N, Cu, L); returns (N, Cout, L) float32.
    mxu_dtype=bfloat16 also stores the inter-kernel HBM activations in bf16
    (halving the real HBM bottleneck); BN statistics / affines stay fp32."""
    if store_dtype is None:
        store_dtype = mxu_dtype

    n, cin, l = x_ncl.shape
    _, cu, _ = u_ncl.shape
    w1 = params["w1"]
    cout, _, k = w1.shape
    if k != 3:
        raise NotImplementedError("kernel_size != 3 not implemented")  # TODO(synk)
    has_shortcut = "ws" in params
    if not has_shortcut:
        assert cin == cout, "identity shortcut requires in_channels == out_channels"

    cin_p = _round_up(cin, LANE)
    cout_p = _round_up(cout, LANE)
    cu_p = _round_up(cu, LANE)

    r = n * l
    # multiple of 16 (bf16 sublane packing), capped so the grid has >= 2 steps (v7x).
    rt = max(16, _round_up(min(row_tile, (r + 1) // 2), 16))
    r_pad = _round_up(r, rt)
    t = r_pad // rt

    # ---- layout: NCL -> channels-last rows, lane-padded channels, store_dtype ----
    def to_rows(a_ncl, c, c_p):
        a = jnp.transpose(a_ncl, (0, 2, 1)).astype(jnp.float32)
        a = jnp.pad(a, ((0, 0), (0, 0), (0, c_p - c))).reshape(r, c_p)
        return jnp.pad(a, ((0, r_pad - r), (0, 0))).astype(store_dtype)

    x_rows = to_rows(x_ncl, cin, cin_p)
    u_rows = to_rows(u_ncl, cu, cu_p)

    # per-row position within its sequence; -1 marks padding rows (drives the
    # zero-padding tap masks and the statistics validity mask inside the kernels).
    pos = jnp.tile(jnp.arange(l, dtype=jnp.int32), n)
    pos = jnp.pad(pos, (0, r_pad - r), constant_values=-1).reshape(r_pad, 1)

    # ---- pack weights / biases (channels-last, lane-padded) ----
    w1_p = _pad_taps(params["w1"], cin_p, cout_p).astype(mxu_dtype)
    w2_p = _pad_taps(params["w2"], cout_p, cout_p).astype(mxu_dtype)
    b1_p = _pad_vec(params["b1"], cout_p)
    b2_p = _pad_vec(params["b2"], cout_p)
    g1_p, be1_p = _pad_vec(params["bn1_gamma"], cout_p), _pad_vec(params["bn1_beta"], cout_p)
    g2_p, be2_p = _pad_vec(params["bn2_gamma"], cout_p), _pad_vec(params["bn2_beta"], cout_p)

    # mod conv (1x1): gamma columns in [:Cout], beta columns in [Cout_p:Cout_p+Cout]
    # so torch.chunk(dim=1) maps to a lane-aligned split.
    wm_t = params["wm"][:, :, 0].astype(jnp.float32).T          # (Cu, 2*Cout)
    wm_p = jnp.zeros((cu_p, 2 * cout_p), jnp.float32)
    wm_p = wm_p.at[:cu, :cout].set(wm_t[:, :cout])
    wm_p = wm_p.at[:cu, cout_p:cout_p + cout].set(wm_t[:, cout:])
    wm_p = wm_p.astype(mxu_dtype)
    bm = params["bm"].astype(jnp.float32)
    bm_p = jnp.zeros((1, 2 * cout_p), jnp.float32)
    bm_p = bm_p.at[0, :cout].set(bm[:cout])
    bm_p = bm_p.at[0, cout_p:cout_p + cout].set(bm[cout:])

    ws_p = None
    if has_shortcut:
        ws_p = jnp.pad(params["ws"][:, :, 0].T.astype(jnp.float32),
                       ((0, cin_p - cin), (0, cout_p - cout))).astype(mxu_dtype)

    # static per-tile valid-row counts for Chan's variance combination
    cnt = jnp.clip(r - jnp.arange(t) * rt, 0, rt).astype(jnp.float32).reshape(t, 1, 1)

    # ---- kernel 1: conv1 (+ fused 1x1 shortcut) + partial statistics ----
    outs = _conv1_call(x_rows, pos, w1_p, b1_p, ws_p,
                       row_tile=rt, seq_len=l, mxu_dtype=mxu_dtype)
    if has_shortcut:
        y1, s1, q1, ys, ss, qs = outs
    else:
        y1, s1, q1 = outs
    sc1, sh1 = _bn_affine(s1, q1, cnt, g1_p, be1_p, r)

    # ---- kernel 2: bn1 affine + ReLU + conv2 + partial statistics ----
    y2, s2, q2 = _conv2_call(y1, pos, sc1, sh1, w2_p, b2_p,
                             row_tile=rt, seq_len=l, mxu_dtype=mxu_dtype)
    sc2, sh2 = _bn_affine(s2, q2, cnt, g2_p, be2_p, r)

    if has_shortcut:
        scr, shr = _bn_affine(ss, qs, cnt, _pad_vec(params["bns_gamma"], cout_p),
                              _pad_vec(params["bns_beta"], cout_p), r)
        res_rows = ys
    else:
        scr = jnp.ones((1, cout_p), jnp.float32)
        shr = jnp.zeros((1, cout_p), jnp.float32)
        res_rows = x_rows

    # ---- kernel 3: fused epilogue (mod conv, FiLM, bn2, shortcut BN, add, ReLU) ----
    out_rows = _epilogue_call(y2, res_rows, u_rows, wm_p, bm_p, sc2, sh2, scr, shr,
                              row_tile=rt, mxu_dtype=mxu_dtype)

    out = out_rows[:r].reshape(n, l, cout_p)[:, :, :cout]
    return jnp.transpose(out, (0, 2, 1))                        # back to (N, Cout, L)


# ---------------------------------------------------------------------------
# Pure-JAX reference (mirrors the PyTorch module in training mode)
# ---------------------------------------------------------------------------

def _reference(x, u, params):
    def conv(inp, w, b, pad):
        y = lax.conv_general_dilated(inp, w, window_strides=(1,),
                                     padding=[(pad, pad)],
                                     dimension_numbers=("NCH", "OIH", "NCH"))
        if b is not None:
            y = y + b[None, :, None]
        return y

    def bn(y, g, b):
        mean = jnp.mean(y, axis=(0, 2), keepdims=True)
        var = jnp.mean((y - mean) ** 2, axis=(0, 2), keepdims=True)
        return (y - mean) * lax.rsqrt(var + _EPS) * g[None, :, None] + b[None, :, None]

    k = params["w1"].shape[-1]
    pad = k // 2
    cout = params["w1"].shape[0]
    if "ws" in params:
        res = bn(conv(x, params["ws"], None, 0),
                 params["bns_gamma"], params["bns_beta"])
    else:
        res = x
    out = jnp.maximum(bn(conv(x, params["w1"], params["b1"], pad),
                         params["bn1_gamma"], params["bn1_beta"]), 0.0)
    out = bn(conv(out, params["w2"], params["b2"], pad),
             params["bn2_gamma"], params["bn2_beta"])
    modp = conv(u, params["wm"], params["bm"], 0)
    gamma_f, beta_f = modp[:, :cout], modp[:, cout:]
    out = gamma_f * out + beta_f + res
    return jnp.maximum(out, 0.0)


def _make_params(key, cin, cout, cu, k, with_shortcut):
    keys = jax.random.split(key, 13)
    p = {
        "w1": 0.3 * jax.random.normal(keys[0], (cout, cin, k), jnp.float32),
        "b1": 0.1 * jax.random.normal(keys[1], (cout,), jnp.float32),
        "bn1_gamma": 1.0 + 0.1 * jax.random.normal(keys[2], (cout,), jnp.float32),
        "bn1_beta": 0.1 * jax.random.normal(keys[3], (cout,), jnp.float32),
        "w2": 0.3 * jax.random.normal(keys[4], (cout, cout, k), jnp.float32),
        "b2": 0.1 * jax.random.normal(keys[5], (cout,), jnp.float32),
        "bn2_gamma": 1.0 + 0.1 * jax.random.normal(keys[6], (cout,), jnp.float32),
        "bn2_beta": 0.1 * jax.random.normal(keys[7], (cout,), jnp.float32),
        "wm": 0.3 * jax.random.normal(keys[8], (2 * cout, cu, 1), jnp.float32),
        "bm": 0.1 * jax.random.normal(keys[9], (2 * cout,), jnp.float32),
    }
    if with_shortcut:
        p["ws"] = 0.3 * jax.random.normal(keys[10], (cout, cin, 1), jnp.float32)
        p["bns_gamma"] = 1.0 + 0.1 * jax.random.normal(keys[11], (cout,), jnp.float32)
        p["bns_beta"] = 0.1 * jax.random.normal(keys[12], (cout,), jnp.float32)
    return p


if __name__ == "__main__":
    key = jax.random.PRNGKey(0)
    k_inp1, k_p1, k_inp2, k_p2 = jax.random.split(key, 4)

    # --- Test 1: projection shortcut (cin != cout). L=15 exercises row padding and
    #     the cross-batch tap masking inside a row tile.
    n, cin, cout, cu, l = 2, 4, 8, 6, 15
    kx, ku = jax.random.split(k_inp1)
    x = 0.5 + jax.random.normal(kx, (n, cin, l), jnp.float32)
    u = jax.random.normal(ku, (n, cu, l), jnp.float32)
    params = _make_params(k_p1, cin, cout, cu, 3, with_shortcut=True)

    out = jax.block_until_ready(residual_block1d(x, u, params))
    ref = _reference(x, u, params)
    assert out.shape == (n, cout, l), out.shape
    err = float(jnp.max(jnp.abs(out - ref)))
    assert jnp.allclose(out, ref, atol=2e-3, rtol=2e-3), err

    # --- Test 2: identity shortcut (cin == cout).
    n2, c2, cu2, l2 = 2, 8, 6, 16
    kx2, ku2 = jax.random.split(k_inp2)
    x2 = jax.random.normal(kx2, (n2, c2, l2), jnp.float32)
    u2 = jax.random.normal(ku2, (n2, cu2, l2), jnp.float32)
    params2 = _make_params(k_p2, c2, c2, cu2, 3, with_shortcut=False)
    out2 = jax.block_until_ready(residual_block1d(x2, u2, params2))
    ref2 = _reference(x2, u2, params2)
    err2 = float(jnp.max(jnp.abs(out2 - ref2)))
    assert jnp.allclose(out2, ref2, atol=2e-3, rtol=2e-3), err2

    # --- bf16 MXU + bf16 HBM-stored activations (production config on v6e/v7x):
    #     run to make sure the path compiles & executes; accuracy is bf16-limited
    #     so it is not compared against the fp32 reference at tight tolerance.
    out_bf16 = jax.block_until_ready(
        residual_block1d(x, u, params, mxu_dtype=jnp.bfloat16))
    assert out_bf16.shape == (n, cout, l)
    assert bool(jnp.all(jnp.isfinite(out_bf16)))

    print("KERNEL_OK")
</pallas_src>

<mosaic_0001>
module attributes {stable_mosaic.version = 11 : i64} {
  func.func @_conv1_sc_kernel(%arg0: i32, %arg1: memref<16x128xf32, #tpu.memory_space<vmem>>, %arg2: memref<16x1xi32, #tpu.memory_space<vmem>>, %arg3: memref<32x128xf32, #tpu.memory_space<any>>, %arg4: memref<3x128x128xf32, #tpu.memory_space<vmem>>, %arg5: memref<1x128xf32, #tpu.memory_space<vmem>>, %arg6: memref<128x128xf32, #tpu.memory_space<vmem>>, %arg7: memref<16x128xf32, #tpu.memory_space<vmem>>, %arg8: memref<1x1x128xf32, #tpu.memory_space<vmem>>, %arg9: memref<1x1x128xf32, #tpu.memory_space<vmem>>, %arg10: memref<16x128xf32, #tpu.memory_space<vmem>>, %arg11: memref<1x1x128xf32, #tpu.memory_space<vmem>>, %arg12: memref<1x1x128xf32, #tpu.memory_space<vmem>>, %arg13: memref<2x1x128xf32, #tpu.memory_space<vmem>>, %arg14: memref<2x!tpu.dma_semaphore, #tpu.memory_space<semaphore_mem>>) attributes {dimension_semantics = [#tpu.dimension_semantics<parallel>], iteration_bounds = array<i64: 2>, scalar_prefetch = 0 : i64, scratch_operands = 2 : i64, tpu.core_type = #tpu.core_type<tc>, window_params = [{transform_indices = @transform_0, window_bounds = array<i64: 16, 128>}, {transform_indices = @transform_1, window_bounds = array<i64: 16, 1>}, {}, {pipeline_mode = #tpu.pipeline_mode<synchronous>, transform_indices = @transform_3, window_bounds = array<i64: 3, 128, 128>}, {pipeline_mode = #tpu.pipeline_mode<synchronous>, transform_indices = @transform_4, window_bounds = array<i64: 1, 128>}, {pipeline_mode = #tpu.pipeline_mode<synchronous>, transform_indices = @transform_5, window_bounds = array<i64: 128, 128>}, {transform_indices = @transform_6, window_bounds = array<i64: 16, 128>}, {transform_indices = @transform_7, window_bounds = array<i64: 1, 1, 128>}, {transform_indices = @transform_8, window_bounds = array<i64: 1, 1, 128>}, {transform_indices = @transform_9, window_bounds = array<i64: 16, 128>}, {transform_indices = @transform_10, window_bounds = array<i64: 1, 1, 128>}, {transform_indices = @transform_11, window_bounds = array<i64: 1, 1, 128>}]} {
    %c16_i32 = arith.constant 16 : i32
    %0 = arith.muli %arg0, %c16_i32 : i32
    %c1_i32 = arith.constant 1 : i32
    %1 = arith.subi %0, %c1_i32 : i32
    %c0_i32 = arith.constant 0 : i32
    %2 = arith.maxsi %1, %c0_i32 : i32
    %c16_i32_0 = arith.constant 16 : i32
    %3 = arith.addi %0, %c16_i32_0 : i32
    %c31_i32 = arith.constant 31 : i32
    %4 = arith.minsi %3, %c31_i32 : i32
    %c0_i32_1 = arith.constant 0 : i32
    %c0_i32_2 = arith.constant 0 : i32
    %c0_i32_3 = arith.constant 0 : i32
    %5 = tpu.memref_slice %arg3[%2, %c0_i32_3] : memref<32x128xf32, #tpu.memory_space<any>> -> memref<1x128xf32, #tpu.memory_space<any>>
    %c0_i32_4 = arith.constant 0 : i32
    %c0_i32_5 = arith.constant 0 : i32
    %6 = tpu.memref_slice %arg13[%c0_i32_1, %c0_i32_4, %c0_i32_5] : memref<2x1x128xf32, #tpu.memory_space<vmem>> -> memref<1x1x128xf32, #tpu.memory_space<vmem>>
    %7 = tpu.memref_squeeze %6 : memref<1x1x128xf32, #tpu.memory_space<vmem>> -> memref<1x128xf32, #tpu.memory_space<vmem>>
    %8 = tpu.memref_slice %arg14[%c0_i32_2] : memref<2x!tpu.dma_semaphore, #tpu.memory_space<semaphore_mem>> -> memref<1x!tpu.dma_semaphore, #tpu.memory_space<semaphore_mem>>
    %9 = tpu.memref_squeeze %8 : memref<1x!tpu.dma_semaphore, #tpu.memory_space<semaphore_mem>> -> memref<!tpu.dma_semaphore, #tpu.memory_space<semaphore_mem>>
    tpu.enqueue_dma source(%5 : memref<1x128xf32, #tpu.memory_space<any>>) target(%7 : memref<1x128xf32, #tpu.memory_space<vmem>>) target_semaphore(%9 : memref<!tpu.dma_semaphore, #tpu.memory_space<semaphore_mem>>)
    %c1_i32_6 = arith.constant 1 : i32
    %c1_i32_7 = arith.constant 1 : i32
    %c0_i32_8 = arith.constant 0 : i32
    %10 = tpu.memref_slice %arg3[%4, %c0_i32_8] : memref<32x128xf32, #tpu.memory_space<any>> -> memref<1x128xf32, #tpu.memory_space<any>>
    %c0_i32_9 = arith.constant 0 : i32
    %c0_i32_10 = arith.constant 0 : i32
    %11 = tpu.memref_slice %arg13[%c1_i32_6, %c0_i32_9, %c0_i32_10] : memref<2x1x128xf32, #tpu.memory_space<vmem>> -> memref<1x1x128xf32, #tpu.memory_space<vmem>>
    %12 = tpu.memref_squeeze %11 : memref<1x1x128xf32, #tpu.memory_space<vmem>> -> memref<1x128xf32, #tpu.memory_space<vmem>>
    %13 = tpu.memref_slice %arg14[%c1_i32_7] : memref<2x!tpu.dma_semaphore, #tpu.memory_space<semaphore_mem>> -> memref<1x!tpu.dma_semaphore, #tpu.memory_space<semaphore_mem>>
    %14 = tpu.memref_squeeze %13 : memref<1x!tpu.dma_semaphore, #tpu.memory_space<semaphore_mem>> -> memref<!tpu.dma_semaphore, #tpu.memory_space<semaphore_mem>>
    tpu.enqueue_dma source(%10 : memref<1x128xf32, #tpu.memory_space<any>>) target(%12 : memref<1x128xf32, #tpu.memory_space<vmem>>) target_semaphore(%14 : memref<!tpu.dma_semaphore, #tpu.memory_space<semaphore_mem>>)
    %c0 = arith.constant 0 : index
    %c0_11 = arith.constant 0 : index
    %15 = vector.load %arg1[%c0, %c0_11] : memref<16x128xf32, #tpu.memory_space<vmem>>, vector<16x128xf32>
    %c0_12 = arith.constant 0 : index
    %c0_13 = arith.constant 0 : index
    %16 = vector.load %arg2[%c0_12, %c0_13] : memref<16x1xi32, #tpu.memory_space<vmem>>, vector<16x1xi32>
    %c0_i32_14 = arith.constant 0 : i32
    %17 = vector.broadcast %c0_i32_14 : i32 to vector<16x1xi32>
    %18 = arith.cmpi sge, %16, %17 : vector<16x1xi32>
    %c1 = arith.constant 1 : index
    %c0_15 = arith.constant 0 : index
    %c0_16 = arith.constant 0 : index
    %19 = vector.load %arg4[%c1, %c0_15, %c0_16] : memref<3x128x128xf32, #tpu.memory_space<vmem>>, vector<1x128x128xf32>
    %20 = vector.shape_cast %19 : vector<1x128x128xf32> to vector<128x128xf32>
    %cst = arith.constant dense<0.000000e+00> : vector<16x128xf32>
    %21 = tpu.matmul %15, %20, %cst {dimension_numbers = #tpu.dot_dimension_numbers<[1], [0], [0], [1], [0, 0, 1, 1], [], []>} : vector<16x128xf32>, vector<128x128xf32>, vector<16x128xf32> -> vector<16x128xf32>
    %c0_17 = arith.constant 0 : index
    %c0_18 = arith.constant 0 : index
    %22 = vector.load %arg6[%c0_17, %c0_18] : memref<128x128xf32, #tpu.memory_space<vmem>>, vector<128x128xf32>
    %cst_19 = arith.constant dense<0.000000e+00> : vector<16x128xf32>
    %23 = tpu.matmul %15, %22, %cst_19 {dimension_numbers = #tpu.dot_dimension_numbers<[1], [0], [0], [1], [0, 0, 1, 1], [], []>} : vector<16x128xf32>, vector<128x128xf32>, vector<16x128xf32> -> vector<16x128xf32>
    %c0_20 = arith.constant 0 : index
    %c0_21 = arith.constant 0 : index
    %24 = vector.load %arg10[%c0_20, %c0_21] : memref<16x128xf32, #tpu.memory_space<vmem>>, vector<16x128xf32>
    tpu.vector_store %arg10[%c0_20, %c0_21], %23 {strides = array<i32>} : memref<16x128xf32, #tpu.memory_space<vmem>>, vector<16x128xf32>,
    %cst_22 = arith.constant 0.000000e+00 : f32
    %25 = vector.shape_cast %18 : vector<16x1xi1> to vector<16x1xi1>
    %26 = vector.broadcast %25 : vector<16x1xi1> to vector<16x128xi1>
    %27 = vector.broadcast %cst_22 : f32 to vector<16x128xf32>
    %28 = arith.select %26, %23, %27 : vector<16x128xi1>, vector<16x128xf32>
    %cst_23 = arith.constant dense<0.000000e+00> : vector<128xf32>
    %29 = vector.multi_reduction <add>, %28, %cst_23 [0] : vector<16x128xf32> to vector<128xf32>
    %30 = vector.shape_cast %29 : vector<128xf32> to vector<1x128xf32>
    %31 = arith.extui %18 : vector<16x1xi1> to vector<16x1xi32>
    %32 = arith.sitofp %31 : vector<16x1xi32> to vector<16x1xf32>
    %cst_24 = arith.constant dense<0.000000e+00> : vector<1xf32>
    %33 = vector.multi_reduction <add>, %32, %cst_24 [0] : vector<16x1xf32> to vector<1xf32>
    %34 = vector.shape_cast %33 : vector<1xf32> to vector<1x1xf32>
    %cst_25 = arith.constant 1.000000e+00 : f32
    %35 = vector.broadcast %cst_25 : f32 to vector<1x1xf32>
    %36 = arith.maximumf %34, %35 : vector<1x1xf32>
    %37 = vector.broadcast %36 : vector<1x1xf32> to vector<1x128xf32>
    %38 = arith.divf %30, %37 : vector<1x128xf32>
    %39 = vector.broadcast %38 : vector<1x128xf32> to vector<16x128xf32>
    %40 = arith.subf %23, %39 : vector<16x128xf32>
    %cst_26 = arith.constant 0.000000e+00 : f32
    %41 = vector.shape_cast %18 : vector<16x1xi1> to vector<16x1xi1>
    %42 = vector.broadcast %41 : vector<16x1xi1> to vector<16x128xi1>
    %43 = vector.broadcast %cst_26 : f32 to vector<16x128xf32>
    %44 = arith.select %42, %40, %43 : vector<16x128xi1>, vector<16x128xf32>
    %45 = arith.mulf %44, %44 : vector<16x128xf32>
    %cst_27 = arith.constant dense<0.000000e+00> : vector<128xf32>
    %46 = vector.multi_reduction <add>, %45, %cst_27 [0] : vector<16x128xf32> to vector<128xf32>
    %47 = vector.shape_cast %46 : vector<128xf32> to vector<1x128xf32>
    %48 = vector.shape_cast %30 : vector<1x128xf32> to vector<1x1x128xf32>
    %c0_28 = arith.constant 0 : index
    %c0_29 = arith.constant 0 : index
    %c0_30 = arith.constant 0 : index
    %49 = vector.load %arg11[%c0_28, %c0_29, %c0_30] : memref<1x1x128xf32, #tpu.memory_space<vmem>>, vector<1x1x128xf32>
    tpu.vector_store %arg11[%c0_28, %c0_29, %c0_30], %48 {strides = array<i32>} : memref<1x1x128xf32, #tpu.memory_space<vmem>>, vector<1x1x128xf32>,
    %50 = vector.shape_cast %47 : vector<1x128xf32> to vector<1x1x128xf32>
    %c0_31 = arith.constant 0 : index
    %c0_32 = arith.constant 0 : index
    %c0_33 = arith.constant 0 : index
    %51 = vector.load %arg12[%c0_31, %c0_32, %c0_33] : memref<1x1x128xf32, #tpu.memory_space<vmem>>, vector<1x1x128xf32>
    tpu.vector_store %arg12[%c0_31, %c0_32, %c0_33], %50 {strides = array<i32>} : memref<1x1x128xf32, #tpu.memory_space<vmem>>, vector<1x1x128xf32>,
    %c0_i32_34 = arith.constant 0 : i32
    %c0_i32_35 = arith.constant 0 : i32
    %c0_i32_36 = arith.constant 0 : i32
    %52 = tpu.memref_slice %arg3[%2, %c0_i32_36] : memref<32x128xf32, #tpu.memory_space<any>> -> memref<1x128xf32, #tpu.memory_space<any>>
    %c0_i32_37 = arith.constant 0 : i32
    %c0_i32_38 = arith.constant 0 : i32
    %53 = tpu.memref_slice %arg13[%c0_i32_34, %c0_i32_37, %c0_i32_38] : memref<2x1x128xf32, #tpu.memory_space<vmem>> -> memref<1x1x128xf32, #tpu.memory_space<vmem>>
    %54 = tpu.memref_squeeze %53 : memref<1x1x128xf32, #tpu.memory_space<vmem>> -> memref<1x128xf32, #tpu.memory_space<vmem>>
    %55 = tpu.memref_slice %arg14[%c0_i32_35] : memref<2x!tpu.dma_semaphore, #tpu.memory_space<semaphore_mem>> -> memref<1x!tpu.dma_semaphore, #tpu.memory_space<semaphore_mem>>
    %56 = tpu.memref_squeeze %55 : memref<1x!tpu.dma_semaphore, #tpu.memory_space<semaphore_mem>> -> memref<!tpu.dma_semaphore, #tpu.memory_space<semaphore_mem>>
    tpu.wait_dma2 semaphore(%56 : memref<!tpu.dma_semaphore, #tpu.memory_space<semaphore_mem>>) src(%52 : memref<1x128xf32, #tpu.memory_space<any>>) dst(%54 : memref<1x128xf32, #tpu.memory_space<vmem>>)
    %c1_i32_39 = arith.constant 1 : i32
    %c1_i32_40 = arith.constant 1 : i32
    %c0_i32_41 = arith.constant 0 : i32
    %57 = tpu.memref_slice %arg3[%4, %c0_i32_41] : memref<32x128xf32, #tpu.memory_space<any>> -> memref<1x128xf32, #tpu.memory_space<any>>
    %c0_i32_42 = arith.constant 0 : i32
    %c0_i32_43 = arith.constant 0 : i32
    %58 = tpu.memref_slice %arg13[%c1_i32_39, %c0_i32_42, %c0_i32_43] : memref<2x1x128xf32, #tpu.memory_space<vmem>> -> memref<1x1x128xf32, #tpu.memory_space<vmem>>
    %59 = tpu.memref_squeeze %58 : memref<1x1x128xf32, #tpu.memory_space<vmem>> -> memref<1x128xf32, #tpu.memory_space<vmem>>
    %60 = tpu.memref_slice %arg14[%c1_i32_40] : memref<2x!tpu.dma_semaphore, #tpu.memory_space<semaphore_mem>> -> memref<1x!tpu.dma_semaphore, #tpu.memory_space<semaphore_mem>>
    %61 = tpu.memref_squeeze %60 : memref<1x!tpu.dma_semaphore, #tpu.memory_space<semaphore_mem>> -> memref<!tpu.dma_semaphore, #tpu.memory_space<semaphore_mem>>
    tpu.wait_dma2 semaphore(%61 : memref<!tpu.dma_semaphore, #tpu.memory_space<semaphore_mem>>) src(%57 : memref<1x128xf32, #tpu.memory_space<any>>) dst(%59 : memref<1x128xf32, #tpu.memory_space<vmem>>)
    %c0_44 = arith.constant 0 : index
    %c0_45 = arith.constant 0 : index
    %c0_46 = arith.constant 0 : index
    %62 = vector.load %arg13[%c0_44, %c0_45, %c0_46] : memref<2x1x128xf32, #tpu.memory_space<vmem>>, vector<1x1x128xf32>
    %63 = vector.shape_cast %62 : vector<1x1x128xf32> to vector<1x128xf32>
    %c1_47 = arith.constant 1 : index
    %c0_48 = arith.constant 0 : index
    %c0_49 = arith.constant 0 : index
    %64 = vector.load %arg13[%c1_47, %c0_48, %c0_49] : memref<2x1x128xf32, #tpu.memory_space<vmem>>, vector<1x1x128xf32>
    %65 = vector.shape_cast %64 : vector<1x1x128xf32> to vector<1x128xf32>
    %c0_50 = arith.constant 0 : index
    %c0_51 = arith.constant 0 : index
    %66 = vector.load %arg5[%c0_50, %c0_51] : memref<1x128xf32, #tpu.memory_space<vmem>>, vector<1x128xf32>
    %67 = vector.extract_strided_slice %15 {offsets = [0, 0], sizes = [15, 128], strides = [1, 1]} : vector<16x128xf32> to vector<15x128xf32>
    %68 = tpu.concatenate %63, %67 in 0 : vector<1x128xf32>, vector<15x128xf32> -> vector<16x128xf32>
    %69 = vector.extract_strided_slice %15 {offsets = [1, 0], sizes = [15, 128], strides = [1, 1]} : vector<16x128xf32> to vector<15x128xf32>
    %70 = tpu.concatenate %69, %65 in 0 : vector<15x128xf32>, vector<1x128xf32> -> vector<16x128xf32>
    %c0_i32_52 = arith.constant 0 : i32
    %71 = vector.broadcast %c0_i32_52 : i32 to vector<16x1xi32>
    %72 = arith.cmpi sgt, %16, %71 : vector<16x1xi32>
    %c0_i32_53 = arith.constant 0 : i32
    %73 = arith.sitofp %c0_i32_53 : i32 to f32
    %74 = vector.shape_cast %72 : vector<16x1xi1> to vector<16x1xi1>
    %75 = vector.broadcast %74 : vector<16x1xi1> to vector<16x128xi1>
    %76 = vector.broadcast %73 : f32 to vector<16x128xf32>
    %77 = arith.select %75, %68, %76 : vector<16x128xi1>, vector<16x128xf32>
    %c0_i32_54 = arith.constant 0 : i32
    %78 = vector.broadcast %c0_i32_54 : i32 to vector<16x1xi32>
    %79 = arith.cmpi sge, %16, %78 : vector<16x1xi32>
    %c14_i32 = arith.constant 14 : i32
    %80 = vector.broadcast %c14_i32 : i32 to vector<16x1xi32>
    %81 = arith.cmpi slt, %16, %80 : vector<16x1xi32>
    %82 = arith.andi %79, %81 : vector<16x1xi1>
    %c0_i32_55 = arith.constant 0 : i32
    %83 = arith.sitofp %c0_i32_55 : i32 to f32
    %84 = vector.shape_cast %82 : vector<16x1xi1> to vector<16x1xi1>
    %85 = vector.broadcast %84 : vector<16x1xi1> to vector<16x128xi1>
    %86 = vector.broadcast %83 : f32 to vector<16x128xf32>
    %87 = arith.select %85, %70, %86 : vector<16x128xi1>, vector<16x128xf32>
    %c0_56 = arith.constant 0 : index
    %c0_57 = arith.constant 0 : index
    %c0_58 = arith.constant 0 : index
    %88 = vector.load %arg4[%c0_56, %c0_57, %c0_58] : memref<3x128x128xf32, #tpu.memory_space<vmem>>, vector<1x128x128xf32>
    %89 = vector.shape_cast %88 : vector<1x128x128xf32> to vector<128x128xf32>
    %cst_59 = arith.constant dense<0.000000e+00> : vector<16x128xf32>
    %90 = tpu.matmul %77, %89, %cst_59 {dimension_numbers = #tpu.dot_dimension_numbers<[1], [0], [0], [1], [0, 0, 1, 1], [], []>} : vector<16x128xf32>, vector<128x128xf32>, vector<16x128xf32> -> vector<16x128xf32>
    %91 = arith.addf %21, %90 : vector<16x128xf32>
    %c2 = arith.constant 2 : index
    %c0_60 = arith.constant 0 : index
    %c0_61 = arith.constant 0 : index
    %92 = vector.load %arg4[%c2, %c0_60, %c0_61] : memref<3x128x128xf32, #tpu.memory_space<vmem>>, vector<1x128x128xf32>
    %93 = vector.shape_cast %92 : vector<1x128x128xf32> to vector<128x128xf32>
    %cst_62 = arith.constant dense<0.000000e+00> : vector<16x128xf32>
    %94 = tpu.matmul %87, %93, %cst_62 {dimension_numbers = #tpu.dot_dimension_numbers<[1], [0], [0], [1], [0, 0, 1, 1], [], []>} : vector<16x128xf32>, vector<128x128xf32>, vector<16x128xf32> -> vector<16x128xf32>
    %95 = arith.addf %91, %94 : vector<16x128xf32>
    %96 = vector.broadcast %66 : vector<1x128xf32> to vector<16x128xf32>
    %97 = arith.addf %95, %96 : vector<16x128xf32>
    %c0_63 = arith.constant 0 : index
    %c0_64 = arith.constant 0 : index
    %98 = vector.load %arg7[%c0_63, %c0_64] : memref<16x128xf32, #tpu.memory_space<vmem>>, vector<16x128xf32>
    tpu.vector_store %arg7[%c0_63, %c0_64], %97 {strides = array<i32>} : memref<16x128xf32, #tpu.memory_space<vmem>>, vector<16x128xf32>,
    %cst_65 = arith.constant 0.000000e+00 : f32
    %99 = vector.shape_cast %18 : vector<16x1xi1> to vector<16x1xi1>
    %100 = vector.broadcast %99 : vector<16x1xi1> to vector<16x128xi1>
    %101 = vector.broadcast %cst_65 : f32 to vector<16x128xf32>
    %102 = arith.select %100, %97, %101 : vector<16x128xi1>, vector<16x128xf32>
    %cst_66 = arith.constant dense<0.000000e+00> : vector<128xf32>
    %103 = vector.multi_reduction <add>, %102, %cst_66 [0] : vector<16x128xf32> to vector<128xf32>
    %104 = vector.shape_cast %103 : vector<128xf32> to vector<1x128xf32>
    %105 = arith.extui %18 : vector<16x1xi1> to vector<16x1xi32>
    %106 = arith.sitofp %105 : vector<16x1xi32> to vector<16x1xf32>
    %cst_67 = arith.constant dense<0.000000e+00> : vector<1xf32>
    %107 = vector.multi_reduction <add>, %106, %cst_67 [0] : vector<16x1xf32> to vector<1xf32>
    %108 = vector.shape_cast %107 : vector<1xf32> to vector<1x1xf32>
    %cst_68 = arith.constant 1.000000e+00 : f32
    %109 = vector.broadcast %cst_68 : f32 to vector<1x1xf32>
    %110 = arith.maximumf %108, %109 : vector<1x1xf32>
    %111 = vector.broadcast %110 : vector<1x1xf32> to vector<1x128xf32>
    %112 = arith.divf %104, %111 : vector<1x128xf32>
    %113 = vector.broadcast %112 : vector<1x128xf32> to vector<16x128xf32>
    %114 = arith.subf %97, %113 : vector<16x128xf32>
    %cst_69 = arith.constant 0.000000e+00 : f32
    %115 = vector.shape_cast %18 : vector<16x1xi1> to vector<16x1xi1>
    %116 = vector.broadcast %115 : vector<16x1xi1> to vector<16x128xi1>
    %117 = vector.broadcast %cst_69 : f32 to vector<16x128xf32>
    %118 = arith.select %116, %114, %117 : vector<16x128xi1>, vector<16x128xf32>
    %119 = arith.mulf %118, %118 : vector<16x128xf32>
    %cst_70 = arith.constant dense<0.000000e+00> : vector<128xf32>
    %120 = vector.multi_reduction <add>, %119, %cst_70 [0] : vector<16x128xf32> to vector<128xf32>
    %121 = vector.shape_cast %120 : vector<128xf32> to vector<1x128xf32>
    %122 = vector.shape_cast %104 : vector<1x128xf32> to vector<1x1x128xf32>
    %c0_71 = arith.constant 0 : index
    %c0_72 = arith.constant 0 : index
    %c0_73 = arith.constant 0 : index
    %123 = vector.load %arg8[%c0_71, %c0_72, %c0_73] : memref<1x1x128xf32, #tpu.memory_space<vmem>>, vector<1x1x128xf32>
    tpu.vector_store %arg8[%c0_71, %c0_72, %c0_73], %122 {strides = array<i32>} : memref<1x1x128xf32, #tpu.memory_space<vmem>>, vector<1x1x128xf32>,
    %124 = vector.shape_cast %121 : vector<1x128xf32> to vector<1x1x128xf32>
    %c0_74 = arith.constant 0 : index
    %c0_75 = arith.constant 0 : index
    %c0_76 = arith.constant 0 : index
    %125 = vector.load %arg9[%c0_74, %c0_75, %c0_76] : memref<1x1x128xf32, #tpu.memory_space<vmem>>, vector<1x1x128xf32>
    tpu.vector_store %arg9[%c0_74, %c0_75, %c0_76], %124 {strides = array<i32>} : memref<1x1x128xf32, #tpu.memory_space<vmem>>, vector<1x1x128xf32>,
    return
  }
  func.func @transform_0(%arg0: i32) -> (i32, i32) {
    %c0_i32 = arith.constant 0 : i32
    %c0_i32_0 = arith.constant 0 : i32
    return %arg0, %c0_i32 : i32, i32
  }
  func.func @transform_1(%arg0: i32) -> (i32, i32) {
    %c0_i32 = arith.constant 0 : i32
    %c0_i32_0 = arith.constant 0 : i32
    return %arg0, %c0_i32 : i32, i32
  }
  func.func @transform_3(%arg0: i32) -> (i32, i32, i32) {
    %c0_i32 = arith.constant 0 : i32
    %c0_i32_0 = arith.constant 0 : i32
    %c0_i32_1 = arith.constant 0 : i32
    %c0_i32_2 = arith.constant 0 : i32
    return %c0_i32, %c0_i32_0, %c0_i32_1 : i32, i32, i32
  }
  func.func @transform_4(%arg0: i32) -> (i32, i32) {
    %c0_i32 = arith.constant 0 : i32
    %c0_i32_0 = arith.constant 0 : i32
    %c0_i32_1 = arith.constant 0 : i32
    return %c0_i32, %c0_i32_0 : i32, i32
  }
  func.func @transform_5(%arg0: i32) -> (i32, i32) {
    %c0_i32 = arith.constant 0 : i32
    %c0_i32_0 = arith.constant 0 : i32
    %c0_i32_1 = arith.constant 0 : i32
    return %c0_i32, %c0_i32_0 : i32, i32
  }
  func.func @transform_6(%arg0: i32) -> (i32, i32) {
    %c0_i32 = arith.constant 0 : i32
    %c0_i32_0 = arith.constant 0 : i32
    return %arg0, %c0_i32 : i32, i32
  }
  func.func @transform_7(%arg0: i32) -> (i32, i32, i32) {
    %c0_i32 = arith.constant 0 : i32
    %c0_i32_0 = arith.constant 0 : i32
    %c0_i32_1 = arith.constant 0 : i32
    return %arg0, %c0_i32, %c0_i32_0 : i32, i32, i32
  }
  func.func @transform_8(%arg0: i32) -> (i32, i32, i32) {
    %c0_i32 = arith.constant 0 : i32
    %c0_i32_0 = arith.constant 0 : i32
    %c0_i32_1 = arith.constant 0 : i32
    return %arg0, %c0_i32, %c0_i32_0 : i32, i32, i32
  }
  func.func @transform_9(%arg0: i32) -> (i32, i32) {
    %c0_i32 = arith.constant 0 : i32
    %c0_i32_0 = arith.constant 0 : i32
    return %arg0, %c0_i32 : i32, i32
  }
  func.func @transform_10(%arg0: i32) -> (i32, i32, i32) {
    %c0_i32 = arith.constant 0 : i32
    %c0_i32_0 = arith.constant 0 : i32
    %c0_i32_1 = arith.constant 0 : i32
    return %arg0, %c0_i32, %c0_i32_0 : i32, i32, i32
  }
  func.func @transform_11(%arg0: i32) -> (i32, i32, i32) {
    %c0_i32 = arith.constant 0 : i32
    %c0_i32_0 = arith.constant 0 : i32
    %c0_i32_1 = arith.constant 0 : i32
    return %arg0, %c0_i32, %c0_i32_0 : i32, i32, i32
  }
}

</mosaic_0001>

<llo_original>
// kernel: tpu_custom_call.1
$region0: #{tpu_custom_call.1}
  #allocation0 [shape = 'u32[]', space=smem, size = 0x4, offset = 0x4, fixed_abs, tag = 'smem constant byte address 0x4 - core index']
  #allocation1 [shape = 'u32[144,128]{1,0:T(1,128)}', space=vmem, size = 0x12000, scoped, tag = 'internal scratch']
  #allocation2 [shape = 'f32[2,1,128]{2,1,0:T(1,128)}', space=vmem, size = 0x400, scoped, tag = 'scratch operand']
  #allocation3 [shape = 's32[2]{0}', space=sflag, size = 0x8, scoped, tag = 'scratch operand']
  #allocation18 [shape = 's32[]', space=sflag, size = 0x4, offset = 0, fixed_abs, tag = 'sflag constant byte address 0x0 - dummy sync flag']
  #allocation19 [shape = 's32[]', space=sflag, size = 0x4, offset = 0, fixed_abs, tag = 'sflag constant byte address 0x0 - dummy sync flag']
  #allocation20 [shape = 'u32[]', space=smem, size = 0x4, offset = 0x44, fixed_abs, tag = 'smem constant byte address 0x44 - assertion arg 0']
  #allocation21 [shape = 'u32[]', space=smem, size = 0x4, offset = 0x48, fixed_abs, tag = 'smem constant byte address 0x48 - assertion arg 1']
  #allocation22 [shape = 's32[]', space=sflag, size = 0x4, offset = 0, fixed_abs, tag = 'sflag constant byte address 0x0 - dummy sync flag']
  #allocation23 [shape = 's32[]', space=sflag, size = 0x4, offset = 0, fixed_abs, tag = 'sflag constant byte address 0x0 - dummy sync flag']
  %s0 = inlined_call_operand.vmem [shape: f32[32,128], index: 0, kind: input, shape index: {}]
  %s1 = inlined_call_operand.vmem [shape: s32[32,1], index: 1, kind: input, shape index: {}]
  %s2 = inlined_call_operand.hbm [shape: f32[32,128], index: 2, kind: input, shape index: {}]
  %s3 = inlined_call_operand.hbm [shape: f32[3,128,128], index: 3, kind: input, shape index: {}]
  %s4 = inlined_call_operand.vmem [shape: f32[1,128], index: 4, kind: input, shape index: {}]
  %s5 = inlined_call_operand.hbm [shape: f32[128,128], index: 5, kind: input, shape index: {}]
  %s6 = inlined_call_operand.hbm [shape: f32[32,128], index: 6, kind: output, shape index: {0}]
  %s7 = inlined_call_operand.hbm [shape: f32[2,1,128], index: 7, kind: output, shape index: {1}]
  %s8 = inlined_call_operand.hbm [shape: f32[2,1,128], index: 8, kind: output, shape index: {2}]
  %s9 = inlined_call_operand.hbm [shape: f32[32,128], index: 9, kind: output, shape index: {3}]
  %s10 = inlined_call_operand.hbm [shape: f32[2,1,128], index: 10, kind: output, shape index: {4}]
  %s11 = inlined_call_operand.hbm [shape: f32[2,1,128], index: 11, kind: output, shape index: {5}]
  %12 = xla_tuple %s6, %s7, %s8, %s9, %s10, %s11
  %s13 = sld [smem:[#allocation0]]
  $region109: #{tpu_custom_call.1} parent=0
    _
  %s15 = ssub.s32 1, %s13
  %s16 = scalar_select 0, %s15, %s13
  $region1: #{tpu_custom_call.1} parent=0
    #allocation4 [shape = 'u8[196608]{0}', space=vmem, size = 0x30000, scoped, tag = 'input window, operand 3, single buffered']
    #allocation5 [shape = 's32[2]{0}', space=sflag, size = 0x8, scoped, tag = 'scoped memory for tpu_custom_call.1']
    #allocation6 [shape = 's32[2]{0}', space=sflag, size = 0x8, scoped, tag = 'scoped memory for tpu_custom_call.1']
    #allocation7 [shape = 'u8[65536]{0}', space=vmem, size = 0x10000, scoped, tag = 'input window, operand 5, single buffered']
    #allocation8 [shape = 's32[1]{0}', space=sflag, size = 0x4, scoped, tag = 'scoped memory for tpu_custom_call.1']
    #allocation9 [shape = 'u8[16384]{0}', space=vmem, size = 0x4000, scoped, tag = 'output window, operand 0']
    #allocation10 [shape = 'u8[1024]{0}', space=vmem, size = 0x400, scoped, tag = 'output window, operand 1']
    #allocation11 [shape = 's32[2]{0}', space=sflag, size = 0x8, scoped, tag = 'scoped memory for tpu_custom_call.1']
    #allocation12 [shape = 'u8[1024]{0}', space=vmem, size = 0x400, scoped, tag = 'output window, operand 2']
    #allocation13 [shape = 'u8[16384]{0}', space=vmem, size = 0x4000, scoped, tag = 'output window, operand 3']
    #allocation14 [shape = 's32[2]{0}', space=sflag, size = 0x8, scoped, tag = 'scoped memory for tpu_custom_call.1']
    #allocation15 [shape = 'u8[1024]{0}', space=vmem, size = 0x400, scoped, tag = 'output window, operand 4']
    #allocation16 [shape = 'u8[1024]{0}', space=vmem, size = 0x400, scoped, tag = 'output window, operand 5']
    #allocation17 [shape = 's32[2]{0}', space=sflag, size = 0x8, scoped, tag = 'scoped memory for tpu_custom_call.1']
    %17 = vsyncpa [#allocation5], 0
    %18 = vsyncpa [#allocation8], 0
    %19 = vsyncpa [#allocation6], 0
    %s20 = scalar_lea.sflag [#allocation6], 1
    %21 = vsyncpa %s20, 0
    %22 = vsyncpa [#allocation11], 0
    %s23 = scalar_lea.sflag [#allocation11], 1
    %24 = vsyncpa %s23, 0
    %25 = vsyncpa [#allocation14], 0
    %s26 = scalar_lea.sflag [#allocation14], 1
    %27 = vsyncpa %s26, 0
    %28 = vsyncpa [#allocation17], 0
    %s29 = scalar_lea.sflag [#allocation17], 1
    %30 = vsyncpa %s29, 0
    loop: start=0, step=1, limit=4
    $region2: #{tpu_custom_call.1} parent=1 // loop_pre_header
      _
    $region3: #{tpu_custom_call.1} parent=1 // loop_header
      %s32 = sphi 0, %s36
      %p33 = scmp.ge.s32.totalorder %s32, 4
      %s42 = sphi 0, %s44
      %s45 = sphi 0, %s42
      %s46 = sphi 0, %s45
      %s62 = sphi 0, %s46
      %s68 = sphi 0, %s70
      %s71 = sphi 0, %s68
      %s72 = sphi 0, %s71
      %s88 = sphi 0, %s72
      %s92 = sphi 0, %s92
      %s94 = sphi 0, %s92
      %s95 = sphi 0, %s94
      %s109 = sphi 0, %s95
      %s113 = sphi 0, %s113
      %s115 = sphi 0, %s113
      %s116 = sphi 0, %s115
      %s130 = sphi 0, %s116
      %s134 = sphi 0, %s134
      %s136 = sphi 0, %s134
      %s137 = sphi 0, %s136
      %s151 = sphi 0, %s137
      %s157 = sphi 0, %s159
      %s160 = sphi 0, %s157
      %s161 = sphi 0, %s160
      %s177 = sphi 0, %s161
      %s183 = sphi 0, %s185
      %s186 = sphi 0, %s183
      %s187 = sphi 0, %s186
      %s203 = sphi 0, %s187
      %s209 = sphi 0, %s211
      %s212 = sphi 0, %s209
      %s213 = sphi 0, %s212
      %s229 = sphi 0, %s213
      %s235 = sphi 0, %s237
      %s238 = sphi 0, %s235
      %s239 = sphi 0, %s238
      %s255 = sphi 0, %s239
      %s261 = sphi 0, %s263
      %s264 = sphi 0, %s261
      %s265 = sphi 0, %s264
      %s281 = sphi 0, %s265
      %s287 = sphi 0, %s289
      %s290 = sphi 0, %s287
      %s291 = sphi 0, %s290
      %s307 = sphi 0, %s291
    $region4: #{tpu_custom_call.1} parent=1 // loop_header_branch
      %35 = sbr.rel (%p33) target = $region8
    $region5: #{tpu_custom_call.1} parent=1 // loop_body
      %s37 = ssub.s32 %s32, 1
      %s38 = ssub.s32 %s32, 2
      %s39 = sadd.s32 %s32, 1
      %s40 = ssub.s32 %s32, %s39
      %p41 = scmp.eq.s32.totalorder %s40, 0
      %s43 = sadd.s32 %s42, 1
      %s44 = scalar_select %p41, %s42, %s43
      %p47 = pneg %p41
      %p48 = scmp.eq.s32.totalorder %s32, 1
      %p49 = por %p47, %p48
      %p50 = scmp.ne.s32.totalorder %s42, %s45
      %p51 = scmp.eq.s32.totalorder %s32, 0
      %p52 = por %p50, %p51
      %p53 = scmp.ne.s32.totalorder %s42, %s45
      %p54 = scmp.eq.s32.totalorder %s37, 1
      %p55 = por %p53, %p54
      %p56 = scmp.ne.s32.totalorder %s45, %s46
      %p57 = scmp.eq.s32.totalorder %s37, 0
      %p58 = por %p56, %p57
      %p59 = scmp.ne.s32.totalorder %s45, %s46
      %p60 = scmp.eq.s32.totalorder %s38, 1
      %p61 = por %p59, %p60
      %p63 = scmp.ne.s32.totalorder %s46, %s62
      %p64 = scmp.eq.s32.totalorder %s38, 0
      %p65 = por %p63, %p64
      %s66 = ssub.s32 %s32, %s39
      %p67 = scmp.eq.s32.totalorder %s66, 0
      %s69 = sadd.s32 %s68, 1
      %s70 = scalar_select %p67, %s68, %s69
      %p73 = pneg %p67
      %p74 = scmp.eq.s32.totalorder %s32, 1
      %p75 = por %p73, %p74
      %p76 = scmp.ne.s32.totalorder %s68, %s71
      %p77 = scmp.eq.s32.totalorder %s32, 0
      %p78 = por %p76, %p77
      %p79 = scmp.ne.s32.totalorder %s68, %s71
      %p80 = scmp.eq.s32.totalorder %s37, 1
      %p81 = por %p79, %p80
      %p82 = scmp.ne.s32.totalorder %s71, %s72
      %p83 = scmp.eq.s32.totalorder %s37, 0
      %p84 = por %p82, %p83
      %p85 = scmp.ne.s32.totalorder %s71, %s72
      %p86 = scmp.eq.s32.totalorder %s38, 1
      %p87 = por %p85, %p86
      %p89 = scmp.ne.s32.totalorder %s72, %s88
      %p90 = scmp.eq.s32.totalorder %s38, 0
      %p91 = por %p89, %p90
      %s93 = sadd.s32 %s92, 1
      %p96 = scmp.eq.s32.totalorder %s32, 1
      %p97 = scmp.ne.s32.totalorder %s92, %s94
      %p98 = scmp.eq.s32.totalorder %s32, 0
      %p99 = por %p97, %p98
      %p100 = scmp.ne.s32.totalorder %s92, %s94
      %p101 = scmp.eq.s32.totalorder %s37, 1
      %p102 = por %p100, %p101
      %p103 = scmp.ne.s32.totalorder %s94, %s95
      %p104 = scmp.eq.s32.totalorder %s37, 0
      %p105 = por %p103, %p104
      %p106 = scmp.ne.s32.totalorder %s94, %s95
      %p107 = scmp.eq.s32.totalorder %s38, 1
      %p108 = por %p106, %p107
      %p110 = scmp.ne.s32.totalorder %s95, %s109
      %p111 = scmp.eq.s32.totalorder %s38, 0
      %p112 = por %p110, %p111
      %s114 = sadd.s32 %s113, 1
      %p117 = scmp.eq.s32.totalorder %s32, 1
      %p118 = scmp.ne.s32.totalorder %s113, %s115
      %p119 = scmp.eq.s32.totalorder %s32, 0
      %p120 = por %p118, %p119
      %p121 = scmp.ne.s32.totalorder %s113, %s115
      %p122 = scmp.eq.s32.totalorder %s37, 1
      %p123 = por %p121, %p122
      %p124 = scmp.ne.s32.totalorder %s115, %s116
      %p125 = scmp.eq.s32.totalorder %s37, 0
      %p126 = por %p124, %p125
      %p127 = scmp.ne.s32.totalorder %s115, %s116
      %p128 = scmp.eq.s32.totalorder %s38, 1
      %p129 = por %p127, %p128
      %p131 = scmp.ne.s32.totalorder %s116, %s130
      %p132 = scmp.eq.s32.totalorder %s38, 0
      %p133 = por %p131, %p132
      %s135 = sadd.s32 %s134, 1
      %p138 = scmp.eq.s32.totalorder %s32, 1
      %p139 = scmp.ne.s32.totalorder %s134, %s136
      %p140 = scmp.eq.s32.totalorder %s32, 0
      %p141 = por %p139, %p140
      %p142 = scmp.ne.s32.totalorder %s134, %s136
      %p143 = scmp.eq.s32.totalorder %s37, 1
      %p144 = por %p142, %p143
      %p145 = scmp.ne.s32.totalorder %s136, %s137
      %p146 = scmp.eq.s32.totalorder %s37, 0
      %p147 = por %p145, %p146
      %p148 = scmp.ne.s32.totalorder %s136, %s137
      %p149 = scmp.eq.s32.totalorder %s38, 1
      %p150 = por %p148, %p149
      %p152 = scmp.ne.s32.totalorder %s137, %s151
      %p153 = scmp.eq.s32.totalorder %s38, 0
      %p154 = por %p152, %p153
      %s155 = ssub.s32 %s32, %s39
      %p156 = scmp.eq.s32.totalorder %s155, 0
      %s158 = sadd.s32 %s157, 1
      %s159 = scalar_select %p156, %s157, %s158
      %p162 = pneg %p156
      %p163 = scmp.eq.s32.totalorder %s32, 1
      %p164 = por %p162, %p163
      %p165 = scmp.ne.s32.totalorder %s157, %s160
      %p166 = scmp.eq.s32.totalorder %s32, 0
      %p167 = por %p165, %p166
      %p168 = scmp.ne.s32.totalorder %s157, %s160
      %p169 = scmp.eq.s32.totalorder %s37, 1
      %p170 = por %p168, %p169
      %p171 = scmp.ne.s32.totalorder %s160, %s161
      %p172 = scmp.eq.s32.totalorder %s37, 0
      %p173 = por %p171, %p172
      %p174 = scmp.ne.s32.totalorder %s160, %s161
      %p175 = scmp.eq.s32.totalorder %s38, 1
      %p176 = por %p174, %p175
      %p178 = scmp.ne.s32.totalorder %s161, %s177
      %p179 = scmp.eq.s32.totalorder %s38, 0
      %p180 = por %p178, %p179
      %s181 = ssub.s32 %s32, %s39
      %p182 = scmp.eq.s32.totalorder %s181, 0
      %s184 = sadd.s32 %s183, 1
      %s185 = scalar_select %p182, %s183, %s184
      %p188 = pneg %p182
      %p189 = scmp.eq.s32.totalorder %s32, 1
      %p190 = por %p188, %p189
      %p191 = scmp.ne.s32.totalorder %s183, %s186
      %p192 = scmp.eq.s32.totalorder %s32, 0
      %p193 = por %p191, %p192
      %p194 = scmp.ne.s32.totalorder %s183, %s186
      %p195 = scmp.eq.s32.totalorder %s37, 1
      %p196 = por %p194, %p195
      %p197 = scmp.ne.s32.totalorder %s186, %s187
      %p198 = scmp.eq.s32.totalorder %s37, 0
      %p199 = por %p197, %p198
      %p200 = scmp.ne.s32.totalorder %s186, %s187
      %p201 = scmp.eq.s32.totalorder %s38, 1
      %p202 = por %p200, %p201
      %p204 = scmp.ne.s32.totalorder %s187, %s203
      %p205 = scmp.eq.s32.totalorder %s38, 0
      %p206 = por %p204, %p205
      %s207 = ssub.s32 %s32, %s39
      %p208 = scmp.eq.s32.totalorder %s207, 0
      %s210 = sadd.s32 %s209, 1
      %s211 = scalar_select %p208, %s209, %s210
      %p214 = pneg %p208
      %p215 = scmp.eq.s32.totalorder %s32, 1
      %p216 = por %p214, %p215
      %p217 = scmp.ne.s32.totalorder %s209, %s212
      %p218 = scmp.eq.s32.totalorder %s32, 0
      %p219 = por %p217, %p218
      %p220 = scmp.ne.s32.totalorder %s209, %s212
      %p221 = scmp.eq.s32.totalorder %s37, 1
      %p222 = por %p220, %p221
      %p223 = scmp.ne.s32.totalorder %s212, %s213
      %p224 = scmp.eq.s32.totalorder %s37, 0
      %p225 = por %p223, %p224
      %p226 = scmp.ne.s32.totalorder %s212, %s213
      %p227 = scmp.eq.s32.totalorder %s38, 1
      %p228 = por %p226, %p227
      %p230 = scmp.ne.s32.totalorder %s213, %s229
      %p231 = scmp.eq.s32.totalorder %s38, 0
      %p232 = por %p230, %p231
      %s233 = ssub.s32 %s32, %s39
      %p234 = scmp.eq.s32.totalorder %s233, 0
      %s236 = sadd.s32 %s235, 1
      %s237 = scalar_select %p234, %s235, %s236
      %p240 = pneg %p234
      %p241 = scmp.eq.s32.totalorder %s32, 1
      %p242 = por %p240, %p241
      %p243 = scmp.ne.s32.totalorder %s235, %s238
      %p244 = scmp.eq.s32.totalorder %s32, 0
      %p245 = por %p243, %p244
      %p246 = scmp.ne.s32.totalorder %s235, %s238
      %p247 = scmp.eq.s32.totalorder %s37, 1
      %p248 = por %p246, %p247
      %p249 = scmp.ne.s32.totalorder %s238, %s239
      %p250 = scmp.eq.s32.totalorder %s37, 0
      %p251 = por %p249, %p250
      %p252 = scmp.ne.s32.totalorder %s238, %s239
      %p253 = scmp.eq.s32.totalorder %s38, 1
      %p254 = por %p252, %p253
      %p256 = scmp.ne.s32.totalorder %s239, %s255
      %p257 = scmp.eq.s32.totalorder %s38, 0
      %p258 = por %p256, %p257
      %s259 = ssub.s32 %s32, %s39
      %p260 = scmp.eq.s32.totalorder %s259, 0
      %s262 = sadd.s32 %s261, 1
      %s263 = scalar_select %p260, %s261, %s262
      %p266 = pneg %p260
      %p267 = scmp.eq.s32.totalorder %s32, 1
      %p268 = por %p266, %p267
      %p269 = scmp.ne.s32.totalorder %s261, %s264
      %p270 = scmp.eq.s32.totalorder %s32, 0
      %p271 = por %p269, %p270
      %p272 = scmp.ne.s32.totalorder %s261, %s264
      %p273 = scmp.eq.s32.totalorder %s37, 1
      %p274 = por %p272, %p273
      %p275 = scmp.ne.s32.totalorder %s264, %s265
      %p276 = scmp.eq.s32.totalorder %s37, 0
      %p277 = por %p275, %p276
      %p278 = scmp.ne.s32.totalorder %s264, %s265
      %p279 = scmp.eq.s32.totalorder %s38, 1
      %p280 = por %p278, %p279
      %p282 = scmp.ne.s32.totalorder %s265, %s281
      %p283 = scmp.eq.s32.totalorder %s38, 0
      %p284 = por %p282, %p283
      %s285 = ssub.s32 %s32, %s39
      %p286 = scmp.eq.s32.totalorder %s285, 0
      %s288 = sadd.s32 %s287, 1
      %s289 = scalar_select %p286, %s287, %s288
      %p292 = pneg %p286
      %p293 = scmp.eq.s32.totalorder %s32, 1
      %p294 = por %p292, %p293
      %p295 = scmp.ne.s32.totalorder %s287, %s290
      %p296 = scmp.eq.s32.totalorder %s32, 0
      %p297 = por %p295, %p296
      %p298 = scmp.ne.s32.totalorder %s287, %s290
      %p299 = scmp.eq.s32.totalorder %s37, 1
      %p300 = por %p298, %p299
      %p301 = scmp.ne.s32.totalorder %s290, %s291
      %p302 = scmp.eq.s32.totalorder %s37, 0
      %p303 = por %p301, %p302
      %p304 = scmp.ne.s32.totalorder %s290, %s291
      %p305 = scmp.eq.s32.totalorder %s38, 1
      %p306 = por %p304, %p305
      %p308 = scmp.ne.s32.totalorder %s291, %s307
      %p309 = scmp.eq.s32.totalorder %s38, 0
      %p310 = por %p308, %p309
      %p311 = scmp.le.s32.totalorder 1, %s32
      %p312 = scmp.lt.s32.totalorder %s32, 3
      %p313 = pnand %p311, %p312
      %p314 = pneg %p313
      // Predicated region
      $region9: #{tpu_custom_call.1} parent=5 // pred_check
        _
      $region10: #{tpu_custom_call.1} parent=5 // pred_check_branch
        %316 = sbr.rel (%p313) target = $region12
      $region11: #{tpu_custom_call.1} parent=5 // pred_region
        %s317 = ssub.s32 %s32, 1
        // Predicated region
        $region13: #{tpu_custom_call.1} parent=11 // pred_check
          %p318 = pneg %p105
        $region14: #{tpu_custom_call.1} parent=11 // pred_check_branch
          %320 = sbr.rel (%p318) target = $region16
        $region15: #{tpu_custom_call.1} parent=11 // pred_region
          %s322 = ssub.s32 6144, 6144
          %323 = vsyncadd [#allocation5], %s322
          %s324 = sshll.u32 [#allocation4], 4
          %s325 = int_to_ptr.vmem [resolvable:$true] %s324
          %330 = dma.hbm_to_vmem [thread:$0]  %s3, 6144, %s325, [#allocation5], 128, 128, 8
        $region16: #{tpu_custom_call.1} parent=11 // pred_fallthru
          _
        // Predicated region
        $region17: #{tpu_custom_call.1} parent=11 // pred_check
          %p331 = pneg %p126
        $region18: #{tpu_custom_call.1} parent=11 // pred_check_branch
          %333 = sbr.rel (%p331) target = $region20
        $region19: #{tpu_custom_call.1} parent=11 // pred_region
          _
        $region20: #{tpu_custom_call.1} parent=11 // pred_fallthru
          _
        // Predicated region
        $region21: #{tpu_custom_call.1} parent=11 // pred_check
          %p334 = pneg %p147
        $region22: #{tpu_custom_call.1} parent=11 // pred_check_branch
          %336 = sbr.rel (%p334) target = $region24
        $region23: #{tpu_custom_call.1} parent=11 // pred_region
          %s338 = ssub.s32 2048, 2048
          %339 = vsyncadd [#allocation8], %s338
          %s340 = sshll.u32 [#allocation7], 4
          %s341 = int_to_ptr.vmem [resolvable:$true] %s340
          %346 = dma.hbm_to_vmem [thread:$0]  %s5, 2048, %s341, [#allocation8], 128, 128, 8
        $region24: #{tpu_custom_call.1} parent=11 // pred_fallthru
          _
      $region12: #{tpu_custom_call.1} parent=5 // pred_fallthru
        _
      %p347 = scmp.lt.s32.totalorder %s32, 2
      // Predicated region
      $region25: #{tpu_custom_call.1} parent=5 // pred_check
        %p348 = pneg %p347
      $region26: #{tpu_custom_call.1} parent=5 // pred_check_branch
        %350 = sbr.rel (%p348) target = $region28
      $region27: #{tpu_custom_call.1} parent=5 // pred_region
        // Predicated region
        $region29: #{tpu_custom_call.1} parent=27 // pred_check
          %p351 = pneg %p52
        $region30: #{tpu_custom_call.1} parent=27 // pred_check_branch
          %353 = sbr.rel (%p351) target = $region32
        $region31: #{tpu_custom_call.1} parent=27 // pred_region
          %s354 = smul.u32 2, %s32
          %p355 = scmp.lt.s32.totalorder %s354, 3
          %s356 = scalar_select %p355, %s354, 3
          %s357 = smul.addr %s356, 8
          %s358 = scalar_lea.vmem %s0, %s357
          %s359 = smul.u32 2, %s32
        $region32: #{tpu_custom_call.1} parent=27 // pred_fallthru
          _
        // Predicated region
        $region33: #{tpu_custom_call.1} parent=27 // pred_check
          %p360 = pneg %p78
        $region34: #{tpu_custom_call.1} parent=27 // pred_check_branch
          %362 = sbr.rel (%p360) target = $region36
        $region35: #{tpu_custom_call.1} parent=27 // pred_region
          %s363 = smul.u32 2, %s32
          %p364 = scmp.lt.s32.totalorder %s363, 3
          %s365 = scalar_select %p364, %s363, 3
          %s366 = smul.addr %s365, 8
          %s367 = scalar_lea.vmem %s1, %s366
          %s368 = smul.u32 2, %s32
        $region36: #{tpu_custom_call.1} parent=27 // pred_fallthru
          _
      $region28: #{tpu_custom_call.1} parent=5 // pred_fallthru
        _
      %p369 = scmp.le.s32.totalorder 1, %s32
      %p370 = scmp.lt.s32.totalorder %s32, 3
      %p371 = pnand %p369, %p370
      %p372 = pneg %p371
      // Predicated region
      $region37: #{tpu_custom_call.1} parent=5 // pred_check
        _
      $region38: #{tpu_custom_call.1} parent=5 // pred_check_branch
        %374 = sbr.rel (%p371) target = $region40
      $region39: #{tpu_custom_call.1} parent=5 // pred_region
        %s375 = ssub.s32 %s32, 1
        // Predicated region
        $region41: #{tpu_custom_call.1} parent=39 // pred_check
          %p376 = pneg %p105
        $region42: #{tpu_custom_call.1} parent=39 // pred_check_branch
          %378 = sbr.rel (%p376) target = $region44
        $region43: #{tpu_custom_call.1} parent=39 // pred_region
          %379 = dma.done [#allocation5], 6144
        $region44: #{tpu_custom_call.1} parent=39 // pred_fallthru
          _
        // Predicated region
        $region45: #{tpu_custom_call.1} parent=39 // pred_check
          %p380 = pneg %p147
        $region46: #{tpu_custom_call.1} parent=39 // pred_check_branch
          %382 = sbr.rel (%p380) target = $region48
        $region47: #{tpu_custom_call.1} parent=39 // pred_region
          %383 = dma.done [#allocation8], 2048
        $region48: #{tpu_custom_call.1} parent=39 // pred_fallthru
          _
        %s384 = smul.u32 2, %s37
        %p385 = scmp.lt.s32.totalorder %s384, 3
        %s386 = scalar_select %p385, %s384, 3
        %s387 = smul.addr %s386, 8
        %s388 = scalar_lea.vmem %s0, %s387
        %p389 = pneg %p58
        %p390 = pneg %p55
        %s391 = smul.u32 2, %s37
        %p392 = scmp.lt.s32.totalorder %s391, 3
        %s393 = scalar_select %p392, %s391, 3
        %s394 = smul.addr %s393, 8
        %s395 = scalar_lea.vmem %s1, %s394
        %p396 = pneg %p84
        %p397 = pneg %p81
        %p398 = pneg %p105
        %p399 = pneg %p102
        %p400 = pneg %p126
        %p401 = pneg %p123
        %p402 = pneg %p147
        %p403 = pneg %p144
        %p404 = pneg %p173
        %p405 = pneg %p170
        %s406 = sand.u32 %s160, 1
        %s407 = scalar_lea.sflag [#allocation6], %s406
        %s408 = sand.u32 %s160, 1
        %s409 = smul.addr %s408, 16
        %s410 = scalar_lea.vmem [#allocation9], %s409
        %p411 = pneg %p199
        %p412 = pneg %p196
        %s413 = sand.u32 %s37, 1
        %s414 = scalar_lea.sflag [#allocation11], %s413
        %s415 = sand.u32 %s186, 1
        %s416 = scalar_lea.vmem [#allocation10], %s415
        %p417 = pneg %p225
        %p418 = pneg %p222
        %s419 = sand.u32 %s37, 1
        %s420 = scalar_lea.sflag [#allocation11], %s419
        %s421 = sand.u32 %s212, 1
        %s422 = scalar_lea.vmem [#allocation12], %s421
        %p423 = pneg %p251
        %p424 = pneg %p248
        %s425 = sand.u32 %s37, 1
        %s426 = scalar_lea.sflag [#allocation14], %s425
        %s427 = sand.u32 %s238, 1
        %s428 = smul.addr %s427, 16
        %s429 = scalar_lea.vmem [#allocation13], %s428
        %p430 = pneg %p277
        %p431 = pneg %p274
        %s432 = sand.u32 %s37, 1
        %s433 = scalar_lea.sflag [#allocation14], %s432
        %s434 = sand.u32 %s264, 1
        %s435 = scalar_lea.vmem [#allocation15], %s434
        %p436 = pneg %p303
        %p437 = pneg %p300
        %s438 = sand.u32 %s290, 1
        %s439 = scalar_lea.sflag [#allocation17], %s438
        %s440 = sand.u32 %s290, 1
        %s441 = scalar_lea.vmem [#allocation16], %s440
        %s442 = smul.u32 2, %s37
        %p443 = scmp.lt.s32.totalorder %s442, 3
        %s444 = scalar_select %p443, %s442, 3
        %s445 = smul.addr %s444, 8
        %s446 = scalar_lea.vmem %s0, %s445
        %s447 = smul.u32 2, %s37
        %s448 = smul.u32 2, %s37
        %p449 = scmp.lt.s32.totalorder %s448, 3
        %s450 = scalar_select %p449, %s448, 3
        %s451 = smul.addr %s450, 8
        %s452 = scalar_lea.vmem %s1, %s451
        %s453 = smul.u32 2, %s37
        %s454 = smul.u32 2, %s37
        %s455 = smul.u32 2, %s37
        %s456 = smul.u32 %s37, 16
        %s457 = ssub.s32 %s456, 1
        %p458 = scmp.gt.s32.totalorder %s457, 0
        %s459 = scalar_select %p458, %s457, 0
        %s460 = sadd.s32 %s456, 16
        %p461 = scmp.lt.s32.totalorder %s460, 31
        %s462 = scalar_select %p461, %s460, 31
        %s463 = smul.addr %s459, 16
        %s464 = scalar_lea.hbm %s2, %s463
        // Predicated region
        $region49: #{tpu_custom_call.1} parent=39 // pred_check
          _
        $region50: #{tpu_custom_call.1} parent=39 // pred_check_branch
          %466 = sbr.rel target = $region52
        $region51: #{tpu_custom_call.1} parent=39 // pred_region
          %467 = sst [smem:[#allocation20]] [#allocation19]
          %468 = sst [smem:[#allocation21]] [#allocation18]
        $region52: #{tpu_custom_call.1} parent=39 // pred_fallthru
          _
        %470 = shalt.err (0)
        %s472 = sshll.u32 [#allocation2], 4
        %s473 = int_to_ptr.vmem [resolvable:$true] %s472
        %475 = dma.hbm_to_vmem [thread:$0]  %s464, 16, %s473, [#allocation3]
        %s476 = smul.addr %s462, 16
        %s477 = scalar_lea.hbm %s2, %s476
        %s478 = scalar_lea.vmem [#allocation2], 1
        %s479 = scalar_lea.sflag [#allocation3], 1
        // Predicated region
        $region53: #{tpu_custom_call.1} parent=39 // pred_check
          _
        $region54: #{tpu_custom_call.1} parent=39 // pred_check_branch
          %481 = sbr.rel target = $region56
        $region55: #{tpu_custom_call.1} parent=39 // pred_region
          %482 = sst [smem:[#allocation20]] [#allocation23]
          %483 = sst [smem:[#allocation21]] [#allocation22]
        $region56: #{tpu_custom_call.1} parent=39 // pred_fallthru
          _
        %485 = shalt.err (0)
        %s487 = sshll.u32 %s478, 4
        %s488 = int_to_ptr.vmem [resolvable:$true] %s487
        %490 = dma.hbm_to_vmem [thread:$0]  %s477, 16, %s488, %s479
        %v491 = vld [vmem:[%s446] sm:$0xff]
        %v492 = vld [vmem:[%s446 + $0x8] sm:$0xff]
        %v493 = vld [vmem:[%s452] sm:$0xff]
        %v494 = vld [vmem:[%s452 + $0x8] sm:$0xff]
        %vm495 = vcmp.ge.s32.totalorder %v493, 0
        %vm496 = vcmp.ge.s32.totalorder %v494, 0
        %s497 = scalar_lea.vmem [#allocation4], 128
        %v498 = vld [vmem:[%s497] sm:$0xff]
        %v499 = vld [vmem:[%s497 + $0x8] sm:$0xff]
        %v500 = vld [vmem:[%s497 + $0x10] sm:$0xff]
        %v501 = vld [vmem:[%s497 + $0x18] sm:$0xff]
        %v502 = vld [vmem:[%s497 + $0x20] sm:$0xff]
        %v503 = vld [vmem:[%s497 + $0x28] sm:$0xff]
        %v504 = vld [vmem:[%s497 + $0x30] sm:$0xff]
        %v505 = vld [vmem:[%s497 + $0x38] sm:$0xff]
        %v506 = vld [vmem:[%s497 + $0x40] sm:$0xff]
        %v507 = vld [vmem:[%s497 + $0x48] sm:$0xff]
        %v508 = vld [vmem:[%s497 + $0x50] sm:$0xff]
        %v509 = vld [vmem:[%s497 + $0x58] sm:$0xff]
        %v510 = vld [vmem:[%s497 + $0x60] sm:$0xff]
        %v511 = vld [vmem:[%s497 + $0x68] sm:$0xff]
        %v512 = vld [vmem:[%s497 + $0x70] sm:$0xff]
        %v513 = vld [vmem:[%s497 + $0x78] sm:$0xff]
        %v514 = vld [vmem:[#allocation7] sm:$0xff]
        %v515 = vld [vmem:[#allocation7 + $0x8] sm:$0xff]
        %v516 = vld [vmem:[#allocation7 + $0x10] sm:$0xff]
        %v517 = vld [vmem:[#allocation7 + $0x18] sm:$0xff]
        %v518 = vld [vmem:[#allocation7 + $0x20] sm:$0xff]
        %v519 = vld [vmem:[#allocation7 + $0x28] sm:$0xff]
        %v520 = vld [vmem:[#allocation7 + $0x30] sm:$0xff]
        %v521 = vld [vmem:[#allocation7 + $0x38] sm:$0xff]
        %v522 = vld [vmem:[#allocation7 + $0x40] sm:$0xff]
        %v523 = vld [vmem:[#allocation7 + $0x48] sm:$0xff]
        %v524 = vld [vmem:[#allocation7 + $0x50] sm:$0xff]
        %v525 = vld [vmem:[#allocation7 + $0x58] sm:$0xff]
        %v526 = vld [vmem:[#allocation7 + $0x60] sm:$0xff]
        %v527 = vld [vmem:[#allocation7 + $0x68] sm:$0xff]
        %v528 = vld [vmem:[#allocation7 + $0x70] sm:$0xff]
        %v529 = vld [vmem:[#allocation7 + $0x78] sm:$0xff]
        %530 = vmatprep.subr.mxu0 0.0
        %531 = vmatpush1.msra.mxu0 %v529
        %532 = vmatprep.subr.mxu0 0.0
        %533 = vmatpush1.msra.mxu0 %v528
        %534 = vmatprep.subr.mxu0 0.0
        %535 = vmatpush1.msra.mxu0 %v527
        %536 = vmatprep.subr.mxu0 0.0
        %537 = vmatpush1.msra.mxu0 %v526
        %538 = vmatprep.subr.mxu0 0.0
        %539 = vmatpush1.msra.mxu0 %v525
        %540 = vmatprep.subr.mxu0 0.0
        %541 = vmatpush1.msra.mxu0 %v524
        %542 = vmatprep.subr.mxu0 0.0
        %543 = vmatpush1.msra.mxu0 %v523
        %544 = vmatprep.subr.mxu0 0.0
        %545 = vmatpush1.msra.mxu0 %v522
        %546 = vmatprep.subr.mxu0 0.0
        %547 = vmatpush1.msra.mxu0 %v521
        %548 = vmatprep.subr.mxu0 0.0
        %549 = vmatpush1.msra.mxu0 %v520
        %550 = vmatprep.subr.mxu0 0.0
        %551 = vmatpush1.msra.mxu0 %v519
        %552 = vmatprep.subr.mxu0 0.0
        %553 = vmatpush1.msra.mxu0 %v518
        %554 = vmatprep.subr.mxu0 0.0
        %555 = vmatpush1.msra.mxu0 %v517
        %556 = vmatprep.subr.mxu0 0.0
        %557 = vmatpush1.msra.mxu0 %v516
        %558 = vmatprep.subr.mxu0 0.0
        %559 = vmatpush1.msra.mxu0 %v515
        %560 = vmatprep.subr.mxu0 0.0
        %561 = vmatpush1.msra.mxu0 %v514
        %562 = vmatprep.subr.mxu0 0.0
        %563 = vmatpush2.msra.mxu0 0.0
        %564 = vmatprep.subr.mxu0 0.0
        %565 = vmatpush2.msra.mxu0 0.0
        %566 = vmatprep.subr.mxu0 0.0
        %567 = vmatpush2.msra.mxu0 0.0
        %568 = vmatprep.subr.mxu0 0.0
        %569 = vmatpush2.msra.mxu0 0.0
        %570 = vmatprep.subr.mxu0 0.0
        %571 = vmatpush2.msra.mxu0 0.0
        %572 = vmatprep.subr.mxu0 0.0
        %573 = vmatpush2.msra.mxu0 0.0
        %574 = vmatprep.subr.mxu0 0.0
        %575 = vmatpush2.msra.mxu0 0.0
        %576 = vmatprep.subr.mxu0 0.0
        %577 = vmatpush2.msra.mxu0 0.0
        %578 = vmatprep.subr.mxu0 0.0
        %579 = vmatpush2.msra.mxu0 0.0
        %580 = vmatprep.subr.mxu0 0.0
        %581 = vmatpush2.msra.mxu0 0.0
        %582 = vmatprep.subr.mxu0 0.0
        %583 = vmatpush2.msra.mxu0 0.0
        %584 = vmatprep.subr.mxu0 0.0
        %585 = vmatpush2.msra.mxu0 0.0
        %586 = vmatprep.subr.mxu0 0.0
        %587 = vmatpush2.msra.mxu0 0.0
        %588 = vmatprep.subr.mxu0 0.0
        %589 = vmatpush2.msra.mxu0 0.0
        %590 = vmatprep.subr.mxu0 0.0
        %591 = vmatpush2.msra.mxu0 0.0
        %592 = vmatprep.subr.mxu0 0.0
        %593 = vmatpush2.msra.mxu0 0.0
        %594 = vmatprep.mubr.f32.mxu0 0.0
        %595 = vmatmul.mubr.f32.gmra.mxu0 %v491
        %v596 = vpop.f32.mrf.mxu0
        %v597 = vadd.f32 0.0, %v596
        %v598 = vpop.f32.mrf.mxu0
        %599 = vmatprep.mubr.f32.mxu0 0.0
        %600 = vmatmul.mubr.f32.gmra.mxu0 %v492
        %v601 = vpop.f32.mrf.mxu0
        %v602 = vadd.f32 0.0, %v601
        %v603 = vpop.f32.mrf.mxu0
        %604 = vdwg.mxu0
        %605 = vst [vmem:[%s429] sm:$0xff] %v597
        %606 = vst [vmem:[%s429 + $0x8] sm:$0xff] %v602
        %v607 = vsel %vm495, 1, 0
        %v608 = vsel %vm496, 1, 0
        %609 = vset.pattern.permute.xlu0 0
        %610 = vperm.xlu0 %609, %v607
        %v611 = vpop.permute.xlu0 %610
        %612 = vset.pattern.permute.xlu0 0
        %613 = vperm.xlu0 %612, %v608
        %v614 = vpop.permute.xlu0 %613
        %vm615 = vcmp.eq.s32.totalorder %v611, 1
        %vm616 = vcmp.eq.s32.totalorder %v614, 1
        %v617 = vsel %vm615, %v597, 0.0
        %v618 = vsel %vm616, %v602, 0.0
        %v619 = vadd.f32 %v617, %v618
        %v620 = vrot.slane %v619, 4
        %v621 = vadd.f32 %v619, %v620
        %v622 = vrot.slane %v621, 2
        %v623 = vadd.f32 %v621, %v622
        %v624 = vrot.slane %v623, 1
        %v625 = vadd.f32 %v623, %v624
        %v626 = vcvt.s32.f32 %v607
        %v627 = vcvt.s32.f32 %v608
        %vm628 = vcmask 7168
        %v629 = vsel %vm628, %v626, 0.0
        %v630 = vsel %vm628, %v627, 0.0
        %v631 = vadd.f32 %v629, %v630
        %v632 = vrot.slane %v631, 4
        %v633 = vadd.f32 %v631, %v632
        %v634 = vrot.slane %v633, 2
        %v635 = vadd.f32 %v633, %v634
        %v636 = vrot.slane %v635, 1
        %v637 = vadd.f32 %v635, %v636
        %v638 = vmax.f32 %v637, 1.0
        %640 = vset.pattern.permute.xlu0 0
        %641 = vperm.xlu0 %640, %v638
        %v642 = vpop.permute.xlu0 %641
        %v644 = vrcp.pop %v642
        %v645 = vmul.f32 %v625, %v644
        %v646 = vsub.f32 %v597, %v645
        %v647 = vsub.f32 %v602, %v645
        %v648 = vsel %vm615, %v646, 0.0
        %v649 = vsel %vm616, %v647, 0.0
        %v650 = vmul.f32 %v648, %v648
        %v651 = vmul.f32 %v649, %v649
        %v652 = vadd.f32 %v650, %v651
        %v653 = vrot.slane %v652, 4
        %v654 = vadd.f32 %v652, %v653
        %v655 = vrot.slane %v654, 2
        %v656 = vadd.f32 %v654, %v655
        %v657 = vrot.slane %v656, 1
        %v658 = vadd.f32 %v656, %v657
        %659 = vst [vmem:[%s435] sm:$0x1] %v625
        %660 = vst [vmem:[%s441] sm:$0x1] %v658
        %s661 = smul.u32 1, 1
        %s662 = sshll.u32 %s661, 4
        %663 = dma.done [#allocation3], %s662
        %s664 = sshll.u32 %s661, 4
        %665 = dma.done %s479, %s664
        %v666 = vld [vmem:[#allocation2] sm:$0x1]
        %v667 = vld [vmem:[%s478] sm:$0x1]
        %v668 = vld [vmem:[%s4] sm:$0x1]
        %vm671 = vcmask 1040384
        %v672 = vrot.slane %v491, 7
        %v673 = vrot.slane %v492, 7
        %v674 = vsel %vm671, %v672, %v673
        %v677 = vsel %vm671, %v666, %v672
        %vm678 = vcmask 1046528
        %v679 = vrot.slane %v491, 1
        %v680 = vrot.slane %v492, 1
        %v681 = vsel %vm678, %v679, %v680
        %v685 = vlaneseq
        %v686 = vshrl.u32 %v685, 7
        %v687 = vsub.s32 0, %v686
        %v688 = vrot.slane %v667, %v687
        %v690 = vsel %vm678, %v680, %v688
        %vm691 = vcmp.gt.s32.totalorder %v493, 0
        %vm692 = vcmp.gt.s32.totalorder %v494, 0
        %v693 = vsel %vm691, 1, 0
        %v694 = vsel %vm692, 1, 0
        %695 = vset.pattern.permute.xlu0 0
        %696 = vperm.xlu0 %695, %v693
        %v697 = vpop.permute.xlu0 %696
        %698 = vset.pattern.permute.xlu0 0
        %699 = vperm.xlu0 %698, %v694
        %v700 = vpop.permute.xlu0 %699
        %vm701 = vcmp.eq.s32.totalorder %v697, 1
        %vm702 = vcmp.eq.s32.totalorder %v700, 1
        %v703 = vsel %vm701, %v677, 0.0
        %v704 = vsel %vm702, %v674, 0.0
        %vm705 = vcmp.lt.s32.totalorder %v493, 14
        %vm706 = vcmp.lt.s32.totalorder %v494, 14
        %vm707 = vmand %vm495, %vm705
        %vm708 = vmand %vm496, %vm706
        %v709 = vsel %vm707, 1, 0
        %v710 = vsel %vm708, 1, 0
        %711 = vset.pattern.permute.xlu0 0
        %712 = vperm.xlu0 %711, %v709
        %v713 = vpop.permute.xlu0 %712
        %714 = vset.pattern.permute.xlu0 0
        %715 = vperm.xlu0 %714, %v710
        %v716 = vpop.permute.xlu0 %715
        %vm717 = vcmp.eq.s32.totalorder %v713, 1
        %vm718 = vcmp.eq.s32.totalorder %v716, 1
        %v719 = vsel %vm717, %v681, 0.0
        %v720 = vsel %vm718, %v690, 0.0
        %v721 = vld [vmem:[#allocation4] sm:$0xff]
        %v722 = vld [vmem:[#allocation4 + $0x8] sm:$0xff]
        %v723 = vld [vmem:[#allocation4 + $0x10] sm:$0xff]
        %v724 = vld [vmem:[#allocation4 + $0x18] sm:$0xff]
        %v725 = vld [vmem:[#allocation4 + $0x20] sm:$0xff]
        %v726 = vld [vmem:[#allocation4 + $0x28] sm:$0xff]
        %v727 = vld [vmem:[#allocation4 + $0x30] sm:$0xff]
        %v728 = vld [vmem:[#allocation4 + $0x38] sm:$0xff]
        %v729 = vld [vmem:[#allocation4 + $0x40] sm:$0xff]
        %v730 = vld [vmem:[#allocation4 + $0x48] sm:$0xff]
        %v731 = vld [vmem:[#allocation4 + $0x50] sm:$0xff]
        %v732 = vld [vmem:[#allocation4 + $0x58] sm:$0xff]
        %v733 = vld [vmem:[#allocation4 + $0x60] sm:$0xff]
        %v734 = vld [vmem:[#allocation4 + $0x68] sm:$0xff]
        %v735 = vld [vmem:[#allocation4 + $0x70] sm:$0xff]
        %v736 = vld [vmem:[#allocation4 + $0x78] sm:$0xff]
        %737 = vmatprep.subr.mxu0 0.0
        %738 = vmatpush1.msra.mxu0 %v736
        %739 = vmatprep.subr.mxu0 0.0
        %740 = vmatpush1.msra.mxu0 %v735
        %741 = vmatprep.subr.mxu0 0.0
        %742 = vmatpush1.msra.mxu0 %v734
        %743 = vmatprep.subr.mxu0 0.0
        %744 = vmatpush1.msra.mxu0 %v733
        %745 = vmatprep.subr.mxu0 0.0
        %746 = vmatpush1.msra.mxu0 %v732
        %747 = vmatprep.subr.mxu0 0.0
        %748 = vmatpush1.msra.mxu0 %v731
        %749 = vmatprep.subr.mxu0 0.0
        %750 = vmatpush1.msra.mxu0 %v730
        %751 = vmatprep.subr.mxu0 0.0
        %752 = vmatpush1.msra.mxu0 %v729
        %753 = vmatprep.subr.mxu0 0.0
        %754 = vmatpush1.msra.mxu0 %v728
        %755 = vmatprep.subr.mxu0 0.0
        %756 = vmatpush1.msra.mxu0 %v727
        %757 = vmatprep.subr.mxu0 0.0
        %758 = vmatpush1.msra.mxu0 %v726
        %759 = vmatprep.subr.mxu0 0.0
        %760 = vmatpush1.msra.mxu0 %v725
        %761 = vmatprep.subr.mxu0 0.0
        %762 = vmatpush1.msra.mxu0 %v724
        %763 = vmatprep.subr.mxu0 0.0
        %764 = vmatpush1.msra.mxu0 %v723
        %765 = vmatprep.subr.mxu0 0.0
        %766 = vmatpush1.msra.mxu0 %v722
        %767 = vmatprep.subr.mxu0 0.0
        %768 = vmatpush1.msra.mxu0 %v721
        %769 = vmatprep.subr.mxu0 0.0
        %770 = vmatpush2.msra.mxu0 0.0
        %771 = vmatprep.subr.mxu0 0.0
        %772 = vmatpush2.msra.mxu0 0.0
        %773 = vmatprep.subr.mxu0 0.0
        %774 = vmatpush2.msra.mxu0 0.0
        %775 = vmatprep.subr.mxu0 0.0
        %776 = vmatpush2.msra.mxu0 0.0
        %777 = vmatprep.subr.mxu0 0.0
        %778 = vmatpush2.msra.mxu0 0.0
        %779 = vmatprep.subr.mxu0 0.0
        %780 = vmatpush2.msra.mxu0 0.0
        %781 = vmatprep.subr.mxu0 0.0
        %782 = vmatpush2.msra.mxu0 0.0
        %783 = vmatprep.subr.mxu0 0.0
        %784 = vmatpush2.msra.mxu0 0.0
        %785 = vmatprep.subr.mxu0 0.0
        %786 = vmatpush2.msra.mxu0 0.0
        %787 = vmatprep.subr.mxu0 0.0
        %788 = vmatpush2.msra.mxu0 0.0
        %789 = vmatprep.subr.mxu0 0.0
        %790 = vmatpush2.msra.mxu0 0.0
        %791 = vmatprep.subr.mxu0 0.0
        %792 = vmatpush2.msra.mxu0 0.0
        %793 = vmatprep.subr.mxu0 0.0
        %794 = vmatpush2.msra.mxu0 0.0
        %795 = vmatprep.subr.mxu0 0.0
        %796 = vmatpush2.msra.mxu0 0.0
        %797 = vmatprep.subr.mxu0 0.0
        %798 = vmatpush2.msra.mxu0 0.0
        %799 = vmatprep.subr.mxu0 0.0
        %800 = vmatpush2.msra.mxu0 0.0
        %801 = vmatprep.mubr.f32.mxu0 0.0
        %802 = vmatmul.mubr.f32.gmra.mxu0 %v703
        %v803 = vpop.f32.mrf.mxu0
        %v804 = vadd.f32 0.0, %v803
        %v805 = vpop.f32.mrf.mxu0
        %806 = vmatprep.mubr.f32.mxu0 0.0
        %807 = vmatmul.mubr.f32.gmra.mxu0 %v704
        %v808 = vpop.f32.mrf.mxu0
        %v809 = vadd.f32 0.0, %v808
        %v810 = vpop.f32.mrf.mxu0
        %811 = vdwg.mxu0
        %812 = vmatprep.subr.mxu0 0.0
        %813 = vmatpush1.msra.mxu0 %v513
        %814 = vmatprep.subr.mxu0 0.0
        %815 = vmatpush1.msra.mxu0 %v512
        %816 = vmatprep.subr.mxu0 0.0
        %817 = vmatpush1.msra.mxu0 %v511
        %818 = vmatprep.subr.mxu0 0.0
        %819 = vmatpush1.msra.mxu0 %v510
        %820 = vmatprep.subr.mxu0 0.0
        %821 = vmatpush1.msra.mxu0 %v509
        %822 = vmatprep.subr.mxu0 0.0
        %823 = vmatpush1.msra.mxu0 %v508
        %824 = vmatprep.subr.mxu0 0.0
        %825 = vmatpush1.msra.mxu0 %v507
        %826 = vmatprep.subr.mxu0 0.0
        %827 = vmatpush1.msra.mxu0 %v506
        %828 = vmatprep.subr.mxu0 0.0
        %829 = vmatpush1.msra.mxu0 %v505
        %830 = vmatprep.subr.mxu0 0.0
        %831 = vmatpush1.msra.mxu0 %v504
        %832 = vmatprep.subr.mxu0 0.0
        %833 = vmatpush1.msra.mxu0 %v503
        %834 = vmatprep.subr.mxu0 0.0
        %835 = vmatpush1.msra.mxu0 %v502
        %836 = vmatprep.subr.mxu0 0.0
        %837 = vmatpush1.msra.mxu0 %v501
        %838 = vmatprep.subr.mxu0 0.0
        %839 = vmatpush1.msra.mxu0 %v500
        %840 = vmatprep.subr.mxu0 0.0
        %841 = vmatpush1.msra.mxu0 %v499
        %842 = vmatprep.subr.mxu0 0.0
        %843 = vmatpush1.msra.mxu0 %v498
        %844 = vmatprep.subr.mxu0 0.0
        %845 = vmatpush2.msra.mxu0 0.0
        %846 = vmatprep.subr.mxu0 0.0
        %847 = vmatpush2.msra.mxu0 0.0
        %848 = vmatprep.subr.mxu0 0.0
        %849 = vmatpush2.msra.mxu0 0.0
        %850 = vmatprep.subr.mxu0 0.0
        %851 = vmatpush2.msra.mxu0 0.0
        %852 = vmatprep.subr.mxu0 0.0
        %853 = vmatpush2.msra.mxu0 0.0
        %854 = vmatprep.subr.mxu0 0.0
        %855 = vmatpush2.msra.mxu0 0.0
        %856 = vmatprep.subr.mxu0 0.0
        %857 = vmatpush2.msra.mxu0 0.0
        %858 = vmatprep.subr.mxu0 0.0
        %859 = vmatpush2.msra.mxu0 0.0
        %860 = vmatprep.subr.mxu0 0.0
        %861 = vmatpush2.msra.mxu0 0.0
        %862 = vmatprep.subr.mxu0 0.0
        %863 = vmatpush2.msra.mxu0 0.0
        %864 = vmatprep.subr.mxu0 0.0
        %865 = vmatpush2.msra.mxu0 0.0
        %866 = vmatprep.subr.mxu0 0.0
        %867 = vmatpush2.msra.mxu0 0.0
        %868 = vmatprep.subr.mxu0 0.0
        %869 = vmatpush2.msra.mxu0 0.0
        %870 = vmatprep.subr.mxu0 0.0
        %871 = vmatpush2.msra.mxu0 0.0
        %872 = vmatprep.subr.mxu0 0.0
        %873 = vmatpush2.msra.mxu0 0.0
        %874 = vmatprep.subr.mxu0 0.0
        %875 = vmatpush2.msra.mxu0 0.0
        %876 = vmatprep.mubr.f32.mxu0 0.0
        %877 = vmatmul.mubr.f32.gmra.mxu0 %v491
        %v878 = vpop.f32.mrf.mxu0
        %v879 = vadd.f32 %v804, %v878
        %v880 = vpop.f32.mrf.mxu0
        %881 = vmatprep.mubr.f32.mxu0 0.0
        %882 = vmatmul.mubr.f32.gmra.mxu0 %v492
        %v883 = vpop.f32.mrf.mxu0
        %v884 = vadd.f32 %v809, %v883
        %v885 = vpop.f32.mrf.mxu0
        %886 = vdwg.mxu0
        %s887 = scalar_lea.vmem [#allocation4], 256
        %v888 = vld [vmem:[%s887] sm:$0xff]
        %v889 = vld [vmem:[%s887 + $0x8] sm:$0xff]
        %v890 = vld [vmem:[%s887 + $0x10] sm:$0xff]
        %v891 = vld [vmem:[%s887 + $0x18] sm:$0xff]
        %v892 = vld [vmem:[%s887 + $0x20] sm:$0xff]
        %v893 = vld [vmem:[%s887 + $0x28] sm:$0xff]
        %v894 = vld [vmem:[%s887 + $0x30] sm:$0xff]
        %v895 = vld [vmem:[%s887 + $0x38] sm:$0xff]
        %v896 = vld [vmem:[%s887 + $0x40] sm:$0xff]
        %v897 = vld [vmem:[%s887 + $0x48] sm:$0xff]
        %v898 = vld [vmem:[%s887 + $0x50] sm:$0xff]
        %v899 = vld [vmem:[%s887 + $0x58] sm:$0xff]
        %v900 = vld [vmem:[%s887 + $0x60] sm:$0xff]
        %v901 = vld [vmem:[%s887 + $0x68] sm:$0xff]
        %v902 = vld [vmem:[%s887 + $0x70] sm:$0xff]
        %v903 = vld [vmem:[%s887 + $0x78] sm:$0xff]
        %904 = vmatprep.subr.mxu0 0.0
        %905 = vmatpush1.msra.mxu0 %v903
        %906 = vmatprep.subr.mxu0 0.0
        %907 = vmatpush1.msra.mxu0 %v902
        %908 = vmatprep.subr.mxu0 0.0
        %909 = vmatpush1.msra.mxu0 %v901
        %910 = vmatprep.subr.mxu0 0.0
        %911 = vmatpush1.msra.mxu0 %v900
        %912 = vmatprep.subr.mxu0 0.0
        %913 = vmatpush1.msra.mxu0 %v899
        %914 = vmatprep.subr.mxu0 0.0
        %915 = vmatpush1.msra.mxu0 %v898
        %916 = vmatprep.subr.mxu0 0.0
        %917 = vmatpush1.msra.mxu0 %v897
        %918 = vmatprep.subr.mxu0 0.0
        %919 = vmatpush1.msra.mxu0 %v896
        %920 = vmatprep.subr.mxu0 0.0
        %921 = vmatpush1.msra.mxu0 %v895
        %922 = vmatprep.subr.mxu0 0.0
        %923 = vmatpush1.msra.mxu0 %v894
        %924 = vmatprep.subr.mxu0 0.0
        %925 = vmatpush1.msra.mxu0 %v893
        %926 = vmatprep.subr.mxu0 0.0
        %927 = vmatpush1.msra.mxu0 %v892
        %928 = vmatprep.subr.mxu0 0.0
        %929 = vmatpush1.msra.mxu0 %v891
        %930 = vmatprep.subr.mxu0 0.0
        %931 = vmatpush1.msra.mxu0 %v890
        %932 = vmatprep.subr.mxu0 0.0
        %933 = vmatpush1.msra.mxu0 %v889
        %934 = vmatprep.subr.mxu0 0.0
        %935 = vmatpush1.msra.mxu0 %v888
        %936 = vmatprep.subr.mxu0 0.0
        %937 = vmatpush2.msra.mxu0 0.0
        %938 = vmatprep.subr.mxu0 0.0
        %939 = vmatpush2.msra.mxu0 0.0
        %940 = vmatprep.subr.mxu0 0.0
        %941 = vmatpush2.msra.mxu0 0.0
        %942 = vmatprep.subr.mxu0 0.0
        %943 = vmatpush2.msra.mxu0 0.0
        %944 = vmatprep.subr.mxu0 0.0
        %945 = vmatpush2.msra.mxu0 0.0
        %946 = vmatprep.subr.mxu0 0.0
        %947 = vmatpush2.msra.mxu0 0.0
        %948 = vmatprep.subr.mxu0 0.0
        %949 = vmatpush2.msra.mxu0 0.0
        %950 = vmatprep.subr.mxu0 0.0
        %951 = vmatpush2.msra.mxu0 0.0
        %952 = vmatprep.subr.mxu0 0.0
        %953 = vmatpush2.msra.mxu0 0.0
        %954 = vmatprep.subr.mxu0 0.0
        %955 = vmatpush2.msra.mxu0 0.0
        %956 = vmatprep.subr.mxu0 0.0
        %957 = vmatpush2.msra.mxu0 0.0
        %958 = vmatprep.subr.mxu0 0.0
        %959 = vmatpush2.msra.mxu0 0.0
        %960 = vmatprep.subr.mxu0 0.0
        %961 = vmatpush2.msra.mxu0 0.0
        %962 = vmatprep.subr.mxu0 0.0
        %963 = vmatpush2.msra.mxu0 0.0
        %964 = vmatprep.subr.mxu0 0.0
        %965 = vmatpush2.msra.mxu0 0.0
        %966 = vmatprep.subr.mxu0 0.0
        %967 = vmatpush2.msra.mxu0 0.0
        %968 = vmatprep.mubr.f32.mxu0 0.0
        %969 = vmatmul.mubr.f32.gmra.mxu0 %v719
        %v970 = vpop.f32.mrf.mxu0
        %v971 = vadd.f32 0.0, %v970
        %v972 = vpop.f32.mrf.mxu0
        %973 = vmatprep.mubr.f32.mxu0 0.0
        %974 = vmatmul.mubr.f32.gmra.mxu0 %v720
        %v975 = vpop.f32.mrf.mxu0
        %v976 = vadd.f32 0.0, %v975
        %v977 = vpop.f32.mrf.mxu0
        %978 = vdwg.mxu0
        %v979 = vadd.f32 %v879, %v971
        %v980 = vadd.f32 %v884, %v976
        %v982 = vlaneseq
        %v983 = vshrl.u32 %v982, 7
        %v984 = vsub.s32 0, %v983
        %v985 = vrot.slane %v668, %v984
        %v987 = vadd.f32 %v979, %v985
        %v988 = vadd.f32 %v980, %v985
        %989 = vst [vmem:[%s410] sm:$0xff] %v987
        %990 = vst [vmem:[%s410 + $0x8] sm:$0xff] %v988
        %v991 = vsel %vm615, %v987, 0.0
        %v992 = vsel %vm616, %v988, 0.0
        %v993 = vadd.f32 %v991, %v992
        %v994 = vrot.slane %v993, 4
        %v995 = vadd.f32 %v993, %v994
        %v996 = vrot.slane %v995, 2
        %v997 = vadd.f32 %v995, %v996
        %v998 = vrot.slane %v997, 1
        %v999 = vadd.f32 %v997, %v998
        %v1000 = vmul.f32 %v999, %v644
        %v1001 = vsub.f32 %v987, %v1000
        %v1002 = vsub.f32 %v988, %v1000
        %v1003 = vsel %vm615, %v1001, 0.0
        %v1004 = vsel %vm616, %v1002, 0.0
        %v1005 = vmul.f32 %v1003, %v1003
        %v1006 = vmul.f32 %v1004, %v1004
        %v1007 = vadd.f32 %v1005, %v1006
        %v1008 = vrot.slane %v1007, 4
        %v1009 = vadd.f32 %v1007, %v1008
        %v1010 = vrot.slane %v1009, 2
        %v1011 = vadd.f32 %v1009, %v1010
        %v1012 = vrot.slane %v1011, 1
        %v1013 = vadd.f32 %v1011, %v1012
        %1014 = vst [vmem:[%s416] sm:$0x1] %v999
        %1015 = vst [vmem:[%s422] sm:$0x1] %v1013
        %s1016 = sand.u32 %s160, 1
        %s1017 = scalar_lea.sflag [#allocation6], %s1016
        %s1018 = sand.u32 %s160, 1
        %s1019 = smul.addr %s1018, 16
        %s1020 = scalar_lea.vmem [#allocation9], %s1019
        %s1021 = sand.u32 %s37, 1
        %s1022 = scalar_lea.sflag [#allocation11], %s1021
        %s1023 = sand.u32 %s186, 1
        %s1024 = scalar_lea.vmem [#allocation10], %s1023
        %s1025 = sand.u32 %s37, 1
        %s1026 = scalar_lea.sflag [#allocation11], %s1025
        %s1027 = sand.u32 %s212, 1
        %s1028 = scalar_lea.vmem [#allocation12], %s1027
        %s1029 = sand.u32 %s37, 1
        %s1030 = scalar_lea.sflag [#allocation14], %s1029
        %s1031 = sand.u32 %s238, 1
        %s1032 = smul.addr %s1031, 16
        %s1033 = scalar_lea.vmem [#allocation13], %s1032
        %s1034 = sand.u32 %s37, 1
        %s1035 = scalar_lea.sflag [#allocation14], %s1034
        %s1036 = sand.u32 %s264, 1
        %s1037 = scalar_lea.vmem [#allocation15], %s1036
        %s1038 = sand.u32 %s290, 1
        %s1039 = scalar_lea.sflag [#allocation17], %s1038
        %s1040 = sand.u32 %s290, 1
        %s1041 = scalar_lea.vmem [#allocation16], %s1040
        // Predicated region
        $region57: #{tpu_custom_call.1} parent=39 // pred_check
          %p1042 = pneg %p170
        $region58: #{tpu_custom_call.1} parent=39 // pred_check_branch
          %1044 = sbr.rel (%p1042) target = $region60
        $region59: #{tpu_custom_call.1} parent=39 // pred_region
          %s1045 = smul.u32 2, %s37
          %s1047 = ssub.s32 256, 256
          %1048 = vsyncadd %s1017, %s1047
          %s1049 = smul.addr %s1045, 128
          %s1050 = scalar_lea.hbm %s6, %s1049
          %s1051 = sshll.u32 %s1020, 4
          %s1052 = int_to_ptr.vmem [resolvable:$true] %s1051
          %1057 = dma.vmem_to_hbm [thread:$0]  %s1052, 256, %s1050, %s1017, 128, 128, 8
        $region60: #{tpu_custom_call.1} parent=39 // pred_fallthru
          _
        // Predicated region
        $region61: #{tpu_custom_call.1} parent=39 // pred_check
          %p1058 = pneg %p196
        $region62: #{tpu_custom_call.1} parent=39 // pred_check_branch
          %1060 = sbr.rel (%p1058) target = $region64
        $region63: #{tpu_custom_call.1} parent=39 // pred_region
          %s1062 = ssub.s32 16, 16
          %1063 = vsyncadd %s1022, %s1062
          %s1064 = smul.addr %s37, 16
          %s1065 = scalar_lea.hbm %s7, %s1064
          %s1067 = sshll.u32 %s1024, 4
          %s1068 = int_to_ptr.vmem [resolvable:$true] %s1067
          %1070 = dma.vmem_to_hbm [thread:$0]  %s1068, 16, %s1065, %s1022
        $region64: #{tpu_custom_call.1} parent=39 // pred_fallthru
          _
        // Predicated region
        $region65: #{tpu_custom_call.1} parent=39 // pred_check
          %p1071 = pneg %p222
        $region66: #{tpu_custom_call.1} parent=39 // pred_check_branch
          %1073 = sbr.rel (%p1071) target = $region68
        $region67: #{tpu_custom_call.1} parent=39 // pred_region
          %s1075 = ssub.s32 16, 16
          %1076 = vsyncadd %s1026, %s1075
          %s1077 = smul.addr %s37, 16
          %s1078 = scalar_lea.hbm %s8, %s1077
          %s1080 = sshll.u32 %s1028, 4
          %s1081 = int_to_ptr.vmem [resolvable:$true] %s1080
          %1083 = dma.vmem_to_hbm [thread:$0]  %s1081, 16, %s1078, %s1026
        $region68: #{tpu_custom_call.1} parent=39 // pred_fallthru
          _
        // Predicated region
        $region69: #{tpu_custom_call.1} parent=39 // pred_check
          %p1084 = pneg %p248
        $region70: #{tpu_custom_call.1} parent=39 // pred_check_branch
          %1086 = sbr.rel (%p1084) target = $region72
        $region71: #{tpu_custom_call.1} parent=39 // pred_region
          %s1087 = smul.u32 2, %s37
          %s1089 = ssub.s32 256, 256
          %1090 = vsyncadd %s1030, %s1089
          %s1091 = smul.addr %s1087, 128
          %s1092 = scalar_lea.hbm %s9, %s1091
          %s1093 = sshll.u32 %s1033, 4
          %s1094 = int_to_ptr.vmem [resolvable:$true] %s1093
          %1099 = dma.vmem_to_hbm [thread:$0]  %s1094, 256, %s1092, %s1030, 128, 128, 8
        $region72: #{tpu_custom_call.1} parent=39 // pred_fallthru
          _
        // Predicated region
        $region73: #{tpu_custom_call.1} parent=39 // pred_check
          %p1100 = pneg %p274
        $region74: #{tpu_custom_call.1} parent=39 // pred_check_branch
          %1102 = sbr.rel (%p1100) target = $region76
        $region75: #{tpu_custom_call.1} parent=39 // pred_region
          %s1104 = ssub.s32 16, 16
          %1105 = vsyncadd %s1035, %s1104
          %s1106 = smul.addr %s37, 16
          %s1107 = scalar_lea.hbm %s10, %s1106
          %s1109 = sshll.u32 %s1037, 4
          %s1110 = int_to_ptr.vmem [resolvable:$true] %s1109
          %1112 = dma.vmem_to_hbm [thread:$0]  %s1110, 16, %s1107, %s1035
        $region76: #{tpu_custom_call.1} parent=39 // pred_fallthru
          _
        // Predicated region
        $region77: #{tpu_custom_call.1} parent=39 // pred_check
          %p1113 = pneg %p300
        $region78: #{tpu_custom_call.1} parent=39 // pred_check_branch
          %1115 = sbr.rel (%p1113) target = $region80
        $region79: #{tpu_custom_call.1} parent=39 // pred_region
          %s1117 = ssub.s32 16, 16
          %1118 = vsyncadd %s1039, %s1117
          %s1119 = smul.addr %s37, 16
          %s1120 = scalar_lea.hbm %s11, %s1119
          %s1122 = sshll.u32 %s1041, 4
          %s1123 = int_to_ptr.vmem [resolvable:$true] %s1122
          %1125 = dma.vmem_to_hbm [thread:$0]  %s1123, 16, %s1120, %s1039
        $region80: #{tpu_custom_call.1} parent=39 // pred_fallthru
          _
      $region40: #{tpu_custom_call.1} parent=5 // pred_fallthru
        _
      %p1126 = scmp.le.s32.totalorder 2, %s32
      // Predicated region
      $region81: #{tpu_custom_call.1} parent=5 // pred_check
        %p1127 = pneg %p1126
      $region82: #{tpu_custom_call.1} parent=5 // pred_check_branch
        %1129 = sbr.rel (%p1127) target = $region84
      $region83: #{tpu_custom_call.1} parent=5 // pred_region
        %s1130 = ssub.s32 %s32, 2
        // Predicated region
        $region85: #{tpu_custom_call.1} parent=83 // pred_check
          %p1131 = pneg %p176
        $region86: #{tpu_custom_call.1} parent=83 // pred_check_branch
          %1133 = sbr.rel (%p1131) target = $region88
        $region87: #{tpu_custom_call.1} parent=83 // pred_region
          %s1134 = sand.u32 %s161, 1
          %s1135 = scalar_lea.sflag [#allocation6], %s1134
          %s1136 = sand.u32 %s161, 1
          %s1137 = smul.addr %s1136, 16
          %s1138 = scalar_lea.vmem [#allocation9], %s1137
          %1139 = dma.done %s1135, 256
        $region88: #{tpu_custom_call.1} parent=83 // pred_fallthru
          _
        // Predicated region
        $region89: #{tpu_custom_call.1} parent=83 // pred_check
          %p1140 = pneg %p202
        $region90: #{tpu_custom_call.1} parent=83 // pred_check_branch
          %1142 = sbr.rel (%p1140) target = $region92
        $region91: #{tpu_custom_call.1} parent=83 // pred_region
          %s1143 = sand.u32 %s38, 1
          %s1144 = scalar_lea.sflag [#allocation11], %s1143
          %s1145 = sand.u32 %s187, 1
          %s1146 = scalar_lea.vmem [#allocation10], %s1145
          %1147 = dma.done %s1144, 16
        $region92: #{tpu_custom_call.1} parent=83 // pred_fallthru
          _
        // Predicated region
        $region93: #{tpu_custom_call.1} parent=83 // pred_check
          %p1148 = pneg %p228
        $region94: #{tpu_custom_call.1} parent=83 // pred_check_branch
          %1150 = sbr.rel (%p1148) target = $region96
        $region95: #{tpu_custom_call.1} parent=83 // pred_region
          %s1151 = sand.u32 %s38, 1
          %s1152 = scalar_lea.sflag [#allocation11], %s1151
          %s1153 = sand.u32 %s213, 1
          %s1154 = scalar_lea.vmem [#allocation12], %s1153
          %1155 = dma.done %s1152, 16
        $region96: #{tpu_custom_call.1} parent=83 // pred_fallthru
          _
        // Predicated region
        $region97: #{tpu_custom_call.1} parent=83 // pred_check
          %p1156 = pneg %p254
        $region98: #{tpu_custom_call.1} parent=83 // pred_check_branch
          %1158 = sbr.rel (%p1156) target = $region100
        $region99: #{tpu_custom_call.1} parent=83 // pred_region
          %s1159 = sand.u32 %s38, 1
          %s1160 = scalar_lea.sflag [#allocation14], %s1159
          %s1161 = sand.u32 %s239, 1
          %s1162 = smul.addr %s1161, 16
          %s1163 = scalar_lea.vmem [#allocation13], %s1162
          %1164 = dma.done %s1160, 256
        $region100: #{tpu_custom_call.1} parent=83 // pred_fallthru
          _
        // Predicated region
        $region101: #{tpu_custom_call.1} parent=83 // pred_check
          %p1165 = pneg %p280
        $region102: #{tpu_custom_call.1} parent=83 // pred_check_branch
          %1167 = sbr.rel (%p1165) target = $region104
        $region103: #{tpu_custom_call.1} parent=83 // pred_region
          %s1168 = sand.u32 %s38, 1
          %s1169 = scalar_lea.sflag [#allocation14], %s1168
          %s1170 = sand.u32 %s265, 1
          %s1171 = scalar_lea.vmem [#allocation15], %s1170
          %1172 = dma.done %s1169, 16
        $region104: #{tpu_custom_call.1} parent=83 // pred_fallthru
          _
        // Predicated region
        $region105: #{tpu_custom_call.1} parent=83 // pred_check
          %p1173 = pneg %p306
        $region106: #{tpu_custom_call.1} parent=83 // pred_check_branch
          %1175 = sbr.rel (%p1173) target = $region108
        $region107: #{tpu_custom_call.1} parent=83 // pred_region
          %s1176 = sand.u32 %s291, 1
          %s1177 = scalar_lea.sflag [#allocation17], %s1176
          %s1178 = sand.u32 %s291, 1
          %s1179 = scalar_lea.vmem [#allocation16], %s1178
          %1180 = dma.done %s1177, 16
        $region108: #{tpu_custom_call.1} parent=83 // pred_fallthru
          _
      $region84: #{tpu_custom_call.1} parent=5 // pred_fallthru
        _
    $region6: #{tpu_custom_call.1} parent=1 // loop_footer
      %s36 = sadd.s32 1, %s32
    $region7: #{tpu_custom_call.1} parent=1 // loop_footer_branch
      %31 = sbr.rel target = $region3
    $region8: #{tpu_custom_call.1} parent=1 // loop_exit
      _
    %1181 = vsyncpa [#allocation5], 1
    %s1182 = scalar_lea.sflag [#allocation5], 1
    %1183 = vsyncpa %s1182, 1
    %1184 = vsyncpa [#allocation8], 1
    %1185 = vsyncpa [#allocation6], 1
    %s1186 = scalar_lea.sflag [#allocation6], 1
    %1187 = vsyncpa %s1186, 1
    %1188 = vsyncpa [#allocation11], 1
    %s1189 = scalar_lea.sflag [#allocation11], 1
    %1190 = vsyncpa %s1189, 1
    %1191 = vsyncpa [#allocation14], 1
    %s1192 = scalar_lea.sflag [#allocation14], 1
    %1193 = vsyncpa %s1192, 1
    %1194 = vsyncpa [#allocation17], 1
    %s1195 = scalar_lea.sflag [#allocation17], 1
    %1196 = vsyncpa %s1195, 1
  %1197 = vsyncmov [#allocation3]
  %s1198 = vpop.sfrf %1197
  %p1199 = scmp.eq.s32.totalorder %s1198, 0
  %p1200 = pneg %p1199
  %1202 = shalt.err (%p1200)
  %s1203 = scalar_lea.sflag [#allocation3], 1
  %1204 = vsyncmov %s1203
  %s1205 = vpop.sfrf %1204
  %p1206 = scmp.eq.s32.totalorder %s1205, 0
  %p1207 = pneg %p1206
  %1209 = shalt.err (%p1207)

</llo_original>
